<compile_context>
chip_gen: v7x
topology: tpu7x:2x2x1
jax: 0.10.0
libtpu: 0.0.40
codegen_flags: <defaults>
</compile_context>

<pallas_src>
import functools
import math

import jax
import jax.numpy as jnp
from jax.experimental import pallas as pl
from jax.experimental.pallas import tpu as pltpu


OUT_WIDTH = 128   # lane-dense output slab width
H1 = 512          # per-network hidden 1
H2 = 256          # per-network hidden 2


def _round_up(x, m):
    return ((x + m - 1) // m) * m


# ----------------------------------------------------------------------------
# Pallas kernel: fused actor+critic forward for one batch tile
# ----------------------------------------------------------------------------
def actor_critic_kernel(
    action_dim,                    # static (closed over via functools.partial)
    state_ref,                     # (TB, S)        f32
    w1_ref, b1_ref,                # (S, 1024) bf16, (1, 1024) f32   [actor|critic]
    w2a_ref, b2a_ref,              # (512, 256) bf16, (1, 256) f32   actor layer 2
    w2c_ref, b2c_ref,              # (512, 256) bf16, (1, 256) f32   critic layer 2
    w3a_ref, b3a_ref,              # (256, 128) bf16, (1, 128) f32   actor head (padded)
    w3c_ref,                       # (1, 256)  f32   critic head row (VPU path)
    b3c_ref,                       # (1, 128)  f32   critic bias at col A, zeros elsewhere
    out_ref,                       # (TB, 128) f32
):
    A = action_dim

    # Layer 1, actor|critic column-fused:  (TB, S) @ (S, 1024)
    x = state_ref[...].astype(jnp.bfloat16)
    h1 = jnp.tanh(
        jnp.dot(x, w1_ref[...], preferred_element_type=jnp.float32) + b1_ref[...]
    )

    # Layer 2, split into two dense matmuls (no block-diagonal zero MACs).
    # Column 512 split is 128-lane aligned.
    h1a = h1[:, :H1].astype(jnp.bfloat16)
    h1c = h1[:, H1:].astype(jnp.bfloat16)
    h2a = jnp.tanh(
        jnp.dot(h1a, w2a_ref[...], preferred_element_type=jnp.float32) + b2a_ref[...]
    )
    h2c = jnp.tanh(
        jnp.dot(h1c, w2c_ref[...], preferred_element_type=jnp.float32) + b2c_ref[...]
    )

    # Actor head: (TB, 256) @ (256, 128).  Padded columns of w3a/b3a are zero,
    # so tanh(raw) is already exactly zero there (no mask needed for padding).
    raw = (
        jnp.dot(h2a.astype(jnp.bfloat16), w3a_ref[...],
                preferred_element_type=jnp.float32) + b3a_ref[...]
    )
    mean = jnp.tanh(raw)                                   # (TB, 128)

    # Critic head on VPU + lane reduction (avoids a 96%-zero MXU matmul).
    val = jnp.sum(h2c * w3c_ref[...], axis=-1, keepdims=True)   # (TB, 1)

    # Select value into column A; add critic bias (b3c is zero except col A).
    col = jax.lax.broadcasted_iota(jnp.int32, (1, OUT_WIDTH), 1)
    out_ref[...] = jnp.where(col == A, val, mean) + b3c_ref[...]


# ----------------------------------------------------------------------------
# Parameter packing (once, at init / param-prep time -- not per forward call)
# ----------------------------------------------------------------------------
def pack_params(p, action_dim):
    A = action_dim
    assert A + 1 <= OUT_WIDTH, "action_dim must be <= 127 for the packed output slab"

    # layer 1: column concat (actor | critic)
    w1 = jnp.concatenate([p["aw1"], p["cw1"]], axis=1)            # (S, 1024)
    b1 = jnp.concatenate([p["ab1"], p["cb1"]], axis=1)            # (1, 1024)

    # layer 3 actor head padded to a lane-dense 128-wide output
    w3a = jnp.zeros((H2, OUT_WIDTH), jnp.float32).at[:, :A].set(p["aw3"])
    b3a = jnp.zeros((1, OUT_WIDTH), jnp.float32).at[:, :A].set(p["ab3"])

    # layer 3 critic head as a row (used on VPU, kept in f32) + bias at col A
    w3c = p["cw3"].reshape(1, H2)                                 # (1, 256)
    b3c = jnp.zeros((1, OUT_WIDTH), jnp.float32).at[0, A].set(p["cb3"][0, 0])

    return dict(
        w1=w1.astype(jnp.bfloat16), b1=b1,
        w2a=p["aw2"].astype(jnp.bfloat16), b2a=p["ab2"],
        w2c=p["cw2"].astype(jnp.bfloat16), b2c=p["cb2"],
        w3a=w3a.astype(jnp.bfloat16), b3a=b3a,
        w3c=w3c, b3c=b3c,
        log_std=p["log_std"],                                     # (1, A), stays outside the kernel
    )


# ----------------------------------------------------------------------------
# Wrapper
# ----------------------------------------------------------------------------
def _default_tile(B):
    """Batch tile selection.

    Small batches: one tile (per-step overhead would dominate anyway).
    Large batches: >=2 tiles so the "parallel" grid axis can be split across
    v7x's two TensorCores, capped at 1024 rows (fits v7x's 64 MiB VMEM with
    plenty of headroom).
    """
    B8 = _round_up(B, 8)
    if B8 <= 256:
        return B8
    return min(1024, _round_up(pl.cdiv(B8, 2), 8))


def actor_critic_forward(state, packed, action_dim, *, tb=None):
    """Returns (action_mean, action_std, value).

    Equivalent to torch ActorCritic.forward(state); the Normal distribution is
    returned as its (mean, std) parameters.
    """
    B, S = state.shape
    A = action_dim
    assert A + 1 <= OUT_WIDTH, "action_dim must be <= 127 for the packed output slab"

    if tb is None:
        tb = _default_tile(B)
    tb = max(8, _round_up(min(tb, _round_up(B, 8)), 8))

    n_tiles = pl.cdiv(B, tb)
    B_pad = n_tiles * tb
    if B_pad != B:
        state = jnp.pad(state, ((0, B_pad - B), (0, 0)))

    kernel = functools.partial(actor_critic_kernel, A)

    # weights/biases stay VMEM-resident across the batch grid (block index (0,0))
    def resident(shape):
        return pl.BlockSpec(shape, lambda i: (0, 0))

    weight_bytes = sum(
        int(v.size) * v.dtype.itemsize for k, v in packed.items() if k != "log_std"
    )
    macs_per_row = S * 2 * H1 + 2 * (H1 * H2) + H2 * OUT_WIDTH          # MXU
    cost = pl.CostEstimate(
        flops=2 * B_pad * macs_per_row + 2 * B_pad * H2,                # + critic VPU mul/add
        transcendentals=B_pad * (2 * H1 + 2 * H2 + OUT_WIDTH),          # tanh counts
        bytes_accessed=weight_bytes + B_pad * S * 4 + B_pad * OUT_WIDTH * 4,
    )

    cp_kwargs = dict(dimension_semantics=("parallel",))                 # v7x: 2 TCs
    if tb >= 512:
        cp_kwargs["vmem_limit_bytes"] = 48 * 1024 * 1024                # headroom for big tiles

    out = pl.pallas_call(
        kernel,
        out_shape=jax.ShapeDtypeStruct((B_pad, OUT_WIDTH), jnp.float32),
        grid=(n_tiles,),
        in_specs=[
            pl.BlockSpec((tb, S), lambda i: (i, 0)),                    # state tile
            resident(packed["w1"].shape), resident(packed["b1"].shape),
            resident(packed["w2a"].shape), resident(packed["b2a"].shape),
            resident(packed["w2c"].shape), resident(packed["b2c"].shape),
            resident(packed["w3a"].shape), resident(packed["b3a"].shape),
            resident(packed["w3c"].shape), resident(packed["b3c"].shape),
        ],
        out_specs=pl.BlockSpec((tb, OUT_WIDTH), lambda i: (i, 0)),
        compiler_params=pltpu.CompilerParams(**cp_kwargs),
        cost_estimate=cost,
    )(
        state,
        packed["w1"], packed["b1"],
        packed["w2a"], packed["b2a"],
        packed["w2c"], packed["b2c"],
        packed["w3a"], packed["b3a"],
        packed["w3c"], packed["b3c"],
    )

    mean = out[:B, :A]
    value = out[:B, A:A + 1]
    # std is state-independent: computed once here, not in the kernel.
    std = jnp.broadcast_to(jnp.exp(packed["log_std"]), (B, A))
    return mean, std, value


# ----------------------------------------------------------------------------
# Deterministic parameter construction (synthetic, not a checkpoint load)
# ----------------------------------------------------------------------------
def init_params(key, state_dim, action_dim, action_std_init):
    keys = jax.random.split(key, 12)

    def linear(kw, kb, fan_in, fan_out):
        # PyTorch-style uniform(-1/sqrt(fan_in), 1/sqrt(fan_in)) init.
        bound = 1.0 / math.sqrt(fan_in)
        w = jax.random.uniform(kw, (fan_in, fan_out), jnp.float32, -bound, bound)
        b = jax.random.uniform(kb, (1, fan_out), jnp.float32, -bound, bound)
        return w, b

    aw1, ab1 = linear(keys[0], keys[1], state_dim, H1)
    aw2, ab2 = linear(keys[2], keys[3], H1, H2)
    aw3, ab3 = linear(keys[4], keys[5], H2, action_dim)
    cw1, cb1 = linear(keys[6], keys[7], state_dim, H1)
    cw2, cb2 = linear(keys[8], keys[9], H1, H2)
    cw3, cb3 = linear(keys[10], keys[11], H2, 1)
    log_std = jnp.full((1, action_dim), math.log(action_std_init), jnp.float32)

    return dict(
        aw1=aw1, ab1=ab1, aw2=aw2, ab2=ab2, aw3=aw3, ab3=ab3,
        cw1=cw1, cb1=cb1, cw2=cw2, cb2=cb2, cw3=cw3, cb3=cb3,
        log_std=log_std,
    )


# Pure-JAX reference mirroring the kernel's numerics (bf16 MXU operands,
# f32 critic-head row reduction) with the original unfused structure -- checks
# the fusion / packing / tiling plumbing.  NOTE: weights are bf16-quantized,
# so results differ from an f32 PyTorch ActorCritic at ~1e-2 relative level.
def reference_forward_bf16(state, p):
    bf = lambda w: w.astype(jnp.bfloat16)
    dot = lambda a, b: jnp.dot(a.astype(jnp.bfloat16), bf(b),
                               preferred_element_type=jnp.float32)
    h = jnp.tanh(dot(state, p["aw1"]) + p["ab1"])
    h = jnp.tanh(dot(h, p["aw2"]) + p["ab2"])
    mean = jnp.tanh(dot(h, p["aw3"]) + p["ab3"])
    std = jnp.exp(jnp.broadcast_to(p["log_std"], mean.shape))
    g = jnp.tanh(dot(state, p["cw1"]) + p["cb1"])
    g = jnp.tanh(dot(g, p["cw2"]) + p["cb2"])
    value = jnp.sum(g * p["cw3"].reshape(1, H2), axis=-1, keepdims=True) + p["cb3"]
    return mean, std, value


if __name__ == "__main__":
    STATE_DIM = 32
    ACTION_DIM = 8
    ACTION_STD_INIT = 0.6
    BATCH = 40

    key = jax.random.PRNGKey(0)
    k_param, k_state = jax.random.split(key)

    params = init_params(k_param, STATE_DIM, ACTION_DIM, ACTION_STD_INIT)
    packed = pack_params(params, ACTION_DIM)
    state = jax.random.normal(k_state, (BATCH, STATE_DIM), jnp.float32)

    # 1) multi-tile path: B > tb exercises padding, the batch index_map and the
    #    "parallel" grid axis (3 grid steps).
    mean, std, value = actor_critic_forward(state, packed, ACTION_DIM, tb=16)
    jax.block_until_ready((mean, std, value))

    # 2) default adaptive-tile path (single tile at this small batch).
    mean2, std2, value2 = actor_critic_forward(state, packed, ACTION_DIM)
    jax.block_until_ready((mean2, std2, value2))

    # correctness check against the pure-JAX reference with identical bf16 weights
    r_mean, r_std, r_value = reference_forward_bf16(state, params)

    assert mean.shape == (BATCH, ACTION_DIM)
    assert std.shape == (BATCH, ACTION_DIM)
    assert value.shape == (BATCH, 1)
    for m, s, v in ((mean, std, value), (mean2, std2, value2)):
        assert jnp.allclose(m, r_mean, atol=2e-3, rtol=2e-3)
        assert jnp.allclose(s, r_std, atol=1e-6, rtol=1e-6)
        assert jnp.allclose(v, r_value, atol=2e-3, rtol=2e-3)

    # TODO(synk): torch.distributions.Normal object has no Pallas equivalent;
    # the kernel returns its parameters (action_mean, action_std) instead.
    print("KERNEL_OK")
</pallas_src>

<mosaic_0001>
module attributes {stable_mosaic.version = 11 : i64} {
  func.func @actor_critic_kernel(%arg0: i32, %arg1: memref<16x32xf32, #tpu.memory_space<vmem>>, %arg2: memref<32x1024xbf16, #tpu.memory_space<vmem>>, %arg3: memref<1x1024xf32, #tpu.memory_space<vmem>>, %arg4: memref<512x256xbf16, #tpu.memory_space<vmem>>, %arg5: memref<1x256xf32, #tpu.memory_space<vmem>>, %arg6: memref<512x256xbf16, #tpu.memory_space<vmem>>, %arg7: memref<1x256xf32, #tpu.memory_space<vmem>>, %arg8: memref<256x128xbf16, #tpu.memory_space<vmem>>, %arg9: memref<1x128xf32, #tpu.memory_space<vmem>>, %arg10: memref<1x256xf32, #tpu.memory_space<vmem>>, %arg11: memref<1x128xf32, #tpu.memory_space<vmem>>, %arg12: memref<16x128xf32, #tpu.memory_space<vmem>>) attributes {dimension_semantics = [#tpu.dimension_semantics<parallel>], iteration_bounds = array<i64: 3>, scalar_prefetch = 0 : i64, scratch_operands = 0 : i64, tpu.core_type = #tpu.core_type<tc>, window_params = [{transform_indices = @transform_0, window_bounds = array<i64: 16, 32>}, {pipeline_mode = #tpu.pipeline_mode<synchronous>, transform_indices = @transform_1, window_bounds = array<i64: 32, 1024>}, {pipeline_mode = #tpu.pipeline_mode<synchronous>, transform_indices = @transform_2, window_bounds = array<i64: 1, 1024>}, {pipeline_mode = #tpu.pipeline_mode<synchronous>, transform_indices = @transform_3, window_bounds = array<i64: 512, 256>}, {pipeline_mode = #tpu.pipeline_mode<synchronous>, transform_indices = @transform_4, window_bounds = array<i64: 1, 256>}, {pipeline_mode = #tpu.pipeline_mode<synchronous>, transform_indices = @transform_5, window_bounds = array<i64: 512, 256>}, {pipeline_mode = #tpu.pipeline_mode<synchronous>, transform_indices = @transform_6, window_bounds = array<i64: 1, 256>}, {pipeline_mode = #tpu.pipeline_mode<synchronous>, transform_indices = @transform_7, window_bounds = array<i64: 256, 128>}, {pipeline_mode = #tpu.pipeline_mode<synchronous>, transform_indices = @transform_8, window_bounds = array<i64: 1, 128>}, {pipeline_mode = #tpu.pipeline_mode<synchronous>, transform_indices = @transform_9, window_bounds = array<i64: 1, 256>}, {pipeline_mode = #tpu.pipeline_mode<synchronous>, transform_indices = @transform_10, window_bounds = array<i64: 1, 128>}, {transform_indices = @transform_11, window_bounds = array<i64: 16, 128>}]} {
    %c0 = arith.constant 0 : index
    %c0_0 = arith.constant 0 : index
    %0 = vector.load %arg1[%c0, %c0_0] : memref<16x32xf32, #tpu.memory_space<vmem>>, vector<16x32xf32>
    %1 = arith.truncf %0 : vector<16x32xf32> to vector<16x32xbf16>
    %c0_1 = arith.constant 0 : index
    %c0_2 = arith.constant 0 : index
    %2 = vector.load %arg2[%c0_1, %c0_2] : memref<32x1024xbf16, #tpu.memory_space<vmem>>, vector<32x1024xbf16>
    %cst = arith.constant dense<0.000000e+00> : vector<16x1024xf32>
    %3 = tpu.matmul %1, %2, %cst {dimension_numbers = #tpu.dot_dimension_numbers<[1], [0], [0], [1], [0, 0, 1, 1], [], []>} : vector<16x32xbf16>, vector<32x1024xbf16>, vector<16x1024xf32> -> vector<16x1024xf32>
    %c0_3 = arith.constant 0 : index
    %c0_4 = arith.constant 0 : index
    %4 = vector.load %arg3[%c0_3, %c0_4] : memref<1x1024xf32, #tpu.memory_space<vmem>>, vector<1x1024xf32>
    %5 = vector.broadcast %4 : vector<1x1024xf32> to vector<16x1024xf32>
    %6 = arith.addf %3, %5 : vector<16x1024xf32>
    %7 = math.tanh %6 : vector<16x1024xf32>
    %8 = vector.extract_strided_slice %7 {offsets = [0, 0], sizes = [16, 512], strides = [1, 1]} : vector<16x1024xf32> to vector<16x512xf32>
    %9 = arith.truncf %8 : vector<16x512xf32> to vector<16x512xbf16>
    %10 = vector.extract_strided_slice %7 {offsets = [0, 512], sizes = [16, 512], strides = [1, 1]} : vector<16x1024xf32> to vector<16x512xf32>
    %11 = arith.truncf %10 : vector<16x512xf32> to vector<16x512xbf16>
    %c0_5 = arith.constant 0 : index
    %c0_6 = arith.constant 0 : index
    %12 = vector.load %arg4[%c0_5, %c0_6] : memref<512x256xbf16, #tpu.memory_space<vmem>>, vector<512x256xbf16>
    %cst_7 = arith.constant dense<0.000000e+00> : vector<16x256xf32>
    %13 = tpu.matmul %9, %12, %cst_7 {dimension_numbers = #tpu.dot_dimension_numbers<[1], [0], [0], [1], [0, 0, 1, 1], [], []>} : vector<16x512xbf16>, vector<512x256xbf16>, vector<16x256xf32> -> vector<16x256xf32>
    %c0_8 = arith.constant 0 : index
    %c0_9 = arith.constant 0 : index
    %14 = vector.load %arg5[%c0_8, %c0_9] : memref<1x256xf32, #tpu.memory_space<vmem>>, vector<1x256xf32>
    %15 = vector.broadcast %14 : vector<1x256xf32> to vector<16x256xf32>
    %16 = arith.addf %13, %15 : vector<16x256xf32>
    %17 = math.tanh %16 : vector<16x256xf32>
    %c0_10 = arith.constant 0 : index
    %c0_11 = arith.constant 0 : index
    %18 = vector.load %arg6[%c0_10, %c0_11] : memref<512x256xbf16, #tpu.memory_space<vmem>>, vector<512x256xbf16>
    %cst_12 = arith.constant dense<0.000000e+00> : vector<16x256xf32>
    %19 = tpu.matmul %11, %18, %cst_12 {dimension_numbers = #tpu.dot_dimension_numbers<[1], [0], [0], [1], [0, 0, 1, 1], [], []>} : vector<16x512xbf16>, vector<512x256xbf16>, vector<16x256xf32> -> vector<16x256xf32>
    %c0_13 = arith.constant 0 : index
    %c0_14 = arith.constant 0 : index
    %20 = vector.load %arg7[%c0_13, %c0_14] : memref<1x256xf32, #tpu.memory_space<vmem>>, vector<1x256xf32>
    %21 = vector.broadcast %20 : vector<1x256xf32> to vector<16x256xf32>
    %22 = arith.addf %19, %21 : vector<16x256xf32>
    %23 = math.tanh %22 : vector<16x256xf32>
    %24 = arith.truncf %17 : vector<16x256xf32> to vector<16x256xbf16>
    %c0_15 = arith.constant 0 : index
    %c0_16 = arith.constant 0 : index
    %25 = vector.load %arg8[%c0_15, %c0_16] : memref<256x128xbf16, #tpu.memory_space<vmem>>, vector<256x128xbf16>
    %cst_17 = arith.constant dense<0.000000e+00> : vector<16x128xf32>
    %26 = tpu.matmul %24, %25, %cst_17 {dimension_numbers = #tpu.dot_dimension_numbers<[1], [0], [0], [1], [0, 0, 1, 1], [], []>} : vector<16x256xbf16>, vector<256x128xbf16>, vector<16x128xf32> -> vector<16x128xf32>
    %c0_18 = arith.constant 0 : index
    %c0_19 = arith.constant 0 : index
    %27 = vector.load %arg9[%c0_18, %c0_19] : memref<1x128xf32, #tpu.memory_space<vmem>>, vector<1x128xf32>
    %28 = vector.broadcast %27 : vector<1x128xf32> to vector<16x128xf32>
    %29 = arith.addf %26, %28 : vector<16x128xf32>
    %30 = math.tanh %29 : vector<16x128xf32>
    %c0_20 = arith.constant 0 : index
    %c0_21 = arith.constant 0 : index
    %31 = vector.load %arg10[%c0_20, %c0_21] : memref<1x256xf32, #tpu.memory_space<vmem>>, vector<1x256xf32>
    %32 = vector.broadcast %31 : vector<1x256xf32> to vector<16x256xf32>
    %33 = arith.mulf %23, %32 : vector<16x256xf32>
    %cst_22 = arith.constant dense<0.000000e+00> : vector<16xf32>
    %34 = vector.multi_reduction <add>, %33, %cst_22 [1] : vector<16x256xf32> to vector<16xf32>
    %35 = vector.shape_cast %34 : vector<16xf32> to vector<16x1xf32>
    %36 = tpu.iota {dimensions = array<i32: 1>} : vector<1x128xi32>
    %c8_i32 = arith.constant 8 : i32
    %37 = vector.broadcast %c8_i32 : i32 to vector<1x128xi32>
    %38 = arith.cmpi eq, %36, %37 : vector<1x128xi32>
    %39 = vector.shape_cast %38 : vector<1x128xi1> to vector<1x128xi1>
    %40 = vector.broadcast %39 : vector<1x128xi1> to vector<16x128xi1>
    %41 = vector.shape_cast %35 : vector<16x1xf32> to vector<16x1xf32>
    %42 = vector.broadcast %41 : vector<16x1xf32> to vector<16x128xf32>
    %43 = arith.select %40, %42, %30 : vector<16x128xi1>, vector<16x128xf32>
    %c0_23 = arith.constant 0 : index
    %c0_24 = arith.constant 0 : index
    %44 = vector.load %arg11[%c0_23, %c0_24] : memref<1x128xf32, #tpu.memory_space<vmem>>, vector<1x128xf32>
    %45 = vector.broadcast %44 : vector<1x128xf32> to vector<16x128xf32>
    %46 = arith.addf %43, %45 : vector<16x128xf32>
    %c0_25 = arith.constant 0 : index
    %c0_26 = arith.constant 0 : index
    %47 = vector.load %arg12[%c0_25, %c0_26] : memref<16x128xf32, #tpu.memory_space<vmem>>, vector<16x128xf32>
    tpu.vector_store %arg12[%c0_25, %c0_26], %46 {strides = array<i32>} : memref<16x128xf32, #tpu.memory_space<vmem>>, vector<16x128xf32>,
    return
  }
  func.func @transform_0(%arg0: i32) -> (i32, i32) {
    %c0_i32 = arith.constant 0 : i32
    %c0_i32_0 = arith.constant 0 : i32
    return %arg0, %c0_i32 : i32, i32
  }
  func.func @transform_1(%arg0: i32) -> (i32, i32) {
    %c0_i32 = arith.constant 0 : i32
    %c0_i32_0 = arith.constant 0 : i32
    %c0_i32_1 = arith.constant 0 : i32
    return %c0_i32, %c0_i32_0 : i32, i32
  }
  func.func @transform_2(%arg0: i32) -> (i32, i32) {
    %c0_i32 = arith.constant 0 : i32
    %c0_i32_0 = arith.constant 0 : i32
    %c0_i32_1 = arith.constant 0 : i32
    return %c0_i32, %c0_i32_0 : i32, i32
  }
  func.func @transform_3(%arg0: i32) -> (i32, i32) {
    %c0_i32 = arith.constant 0 : i32
    %c0_i32_0 = arith.constant 0 : i32
    %c0_i32_1 = arith.constant 0 : i32
    return %c0_i32, %c0_i32_0 : i32, i32
  }
  func.func @transform_4(%arg0: i32) -> (i32, i32) {
    %c0_i32 = arith.constant 0 : i32
    %c0_i32_0 = arith.constant 0 : i32
    %c0_i32_1 = arith.constant 0 : i32
    return %c0_i32, %c0_i32_0 : i32, i32
  }
  func.func @transform_5(%arg0: i32) -> (i32, i32) {
    %c0_i32 = arith.constant 0 : i32
    %c0_i32_0 = arith.constant 0 : i32
    %c0_i32_1 = arith.constant 0 : i32
    return %c0_i32, %c0_i32_0 : i32, i32
  }
  func.func @transform_6(%arg0: i32) -> (i32, i32) {
    %c0_i32 = arith.constant 0 : i32
    %c0_i32_0 = arith.constant 0 : i32
    %c0_i32_1 = arith.constant 0 : i32
    return %c0_i32, %c0_i32_0 : i32, i32
  }
  func.func @transform_7(%arg0: i32) -> (i32, i32) {
    %c0_i32 = arith.constant 0 : i32
    %c0_i32_0 = arith.constant 0 : i32
    %c0_i32_1 = arith.constant 0 : i32
    return %c0_i32, %c0_i32_0 : i32, i32
  }
  func.func @transform_8(%arg0: i32) -> (i32, i32) {
    %c0_i32 = arith.constant 0 : i32
    %c0_i32_0 = arith.constant 0 : i32
    %c0_i32_1 = arith.constant 0 : i32
    return %c0_i32, %c0_i32_0 : i32, i32
  }
  func.func @transform_9(%arg0: i32) -> (i32, i32) {
    %c0_i32 = arith.constant 0 : i32
    %c0_i32_0 = arith.constant 0 : i32
    %c0_i32_1 = arith.constant 0 : i32
    return %c0_i32, %c0_i32_0 : i32, i32
  }
  func.func @transform_10(%arg0: i32) -> (i32, i32) {
    %c0_i32 = arith.constant 0 : i32
    %c0_i32_0 = arith.constant 0 : i32
    %c0_i32_1 = arith.constant 0 : i32
    return %c0_i32, %c0_i32_0 : i32, i32
  }
  func.func @transform_11(%arg0: i32) -> (i32, i32) {
    %c0_i32 = arith.constant 0 : i32
    %c0_i32_0 = arith.constant 0 : i32
    return %arg0, %c0_i32 : i32, i32
  }
}

</mosaic_0001>

<llo_original>
// kernel: tpu_custom_call.1
$region0: #{tpu_custom_call.1}
  #allocation0 [shape = 'u32[]', space=smem, size = 0x4, offset = 0x4, fixed_abs, tag = 'smem constant byte address 0x4 - core index']
  #allocation1 [shape = 'u32[144,128]{1,0:T(1,128)}', space=vmem, size = 0x12000, scoped, tag = 'internal scratch']
  %s0 = inlined_call_operand.vmem [shape: f32[48,32], index: 0, kind: input, shape index: {}]
  %s1 = inlined_call_operand.hbm [shape: bf16[32,1024], index: 1, kind: input, shape index: {}]
  %s2 = inlined_call_operand.vmem [shape: f32[1,1024], index: 2, kind: input, shape index: {}]
  %s3 = inlined_call_operand.hbm [shape: bf16[512,256], index: 3, kind: input, shape index: {}]
  %s4 = inlined_call_operand.vmem [shape: f32[1,256], index: 4, kind: input, shape index: {}]
  %s5 = inlined_call_operand.hbm [shape: bf16[512,256], index: 5, kind: input, shape index: {}]
  %s6 = inlined_call_operand.vmem [shape: f32[1,256], index: 6, kind: input, shape index: {}]
  %s7 = inlined_call_operand.hbm [shape: bf16[256,128], index: 7, kind: input, shape index: {}]
  %s8 = inlined_call_operand.vmem [shape: f32[1,128], index: 8, kind: input, shape index: {}]
  %s9 = inlined_call_operand.vmem [shape: f32[1,256], index: 9, kind: input, shape index: {}]
  %s10 = inlined_call_operand.vmem [shape: f32[1,128], index: 10, kind: input, shape index: {}]
  %s11 = inlined_call_operand.hbm [shape: f32[48,128], index: 11, kind: output, shape index: {}]
  %s12 = sld [smem:[#allocation0]]
  $region93: #{tpu_custom_call.1} parent=0
    _
  %s14 = ssub.s32 1, %s12
  %s15 = scalar_select 0, %s14, %s12
  $region1: #{tpu_custom_call.1} parent=0
    #allocation2 [shape = 'u8[65536]{0}', space=vmem, size = 0x10000, scoped, tag = 'input window, operand 1, single buffered']
    #allocation3 [shape = 's32[2]{0}', space=sflag, size = 0x8, scoped, tag = 'scoped memory for tpu_custom_call.1']
    #allocation4 [shape = 's32[2]{0}', space=sflag, size = 0x8, scoped, tag = 'scoped memory for tpu_custom_call.1']
    #allocation5 [shape = 'u8[262144]{0}', space=vmem, size = 0x40000, scoped, tag = 'input window, operand 3, single buffered']
    #allocation6 [shape = 's32[1]{0}', space=sflag, size = 0x4, scoped, tag = 'scoped memory for tpu_custom_call.1']
    #allocation7 [shape = 'u8[262144]{0}', space=vmem, size = 0x40000, scoped, tag = 'input window, operand 5, single buffered']
    #allocation8 [shape = 'u8[65536]{0}', space=vmem, size = 0x10000, scoped, tag = 'input window, operand 7, single buffered']
    #allocation9 [shape = 's32[1]{0}', space=sflag, size = 0x4, scoped, tag = 'scoped memory for tpu_custom_call.1']
    #allocation10 [shape = 'u8[16384]{0}', space=vmem, size = 0x4000, scoped, tag = 'output window, operand 0']
    %16 = vsyncpa [#allocation3], 0
    %17 = vsyncpa [#allocation6], 0
    %18 = vsyncpa [#allocation9], 0
    %19 = vsyncpa [#allocation4], 0
    %s20 = scalar_lea.sflag [#allocation4], 1
    %21 = vsyncpa %s20, 0
    loop: start=0, step=1, limit=5
    $region2: #{tpu_custom_call.1} parent=1 // loop_pre_header
      _
    $region3: #{tpu_custom_call.1} parent=1 // loop_header
      %s23 = sphi 0, %s27
      %p24 = scmp.ge.s32.totalorder %s23, 5
      %s33 = sphi 0, %s35
      %s36 = sphi 0, %s33
      %s37 = sphi 0, %s36
      %s53 = sphi 0, %s37
      %s57 = sphi 0, %s57
      %s59 = sphi 0, %s57
      %s60 = sphi 0, %s59
      %s74 = sphi 0, %s60
      %s78 = sphi 0, %s78
      %s80 = sphi 0, %s78
      %s81 = sphi 0, %s80
      %s95 = sphi 0, %s81
      %s99 = sphi 0, %s99
      %s101 = sphi 0, %s99
      %s102 = sphi 0, %s101
      %s116 = sphi 0, %s102
      %s120 = sphi 0, %s120
      %s122 = sphi 0, %s120
      %s123 = sphi 0, %s122
      %s137 = sphi 0, %s123
      %s141 = sphi 0, %s141
      %s143 = sphi 0, %s141
      %s144 = sphi 0, %s143
      %s158 = sphi 0, %s144
      %s162 = sphi 0, %s162
      %s164 = sphi 0, %s162
      %s165 = sphi 0, %s164
      %s179 = sphi 0, %s165
      %s183 = sphi 0, %s183
      %s185 = sphi 0, %s183
      %s186 = sphi 0, %s185
      %s200 = sphi 0, %s186
      %s204 = sphi 0, %s204
      %s206 = sphi 0, %s204
      %s207 = sphi 0, %s206
      %s221 = sphi 0, %s207
      %s225 = sphi 0, %s225
      %s227 = sphi 0, %s225
      %s228 = sphi 0, %s227
      %s242 = sphi 0, %s228
      %s246 = sphi 0, %s246
      %s248 = sphi 0, %s246
      %s249 = sphi 0, %s248
      %s263 = sphi 0, %s249
      %s269 = sphi 0, %s271
      %s272 = sphi 0, %s269
      %s273 = sphi 0, %s272
      %s289 = sphi 0, %s273
    $region4: #{tpu_custom_call.1} parent=1 // loop_header_branch
      %26 = sbr.rel (%p24) target = $region8
    $region5: #{tpu_custom_call.1} parent=1 // loop_body
      %s28 = ssub.s32 %s23, 1
      %s29 = ssub.s32 %s23, 2
      %s30 = sadd.s32 %s23, 1
      %s31 = ssub.s32 %s23, %s30
      %p32 = scmp.eq.s32.totalorder %s31, 0
      %s34 = sadd.s32 %s33, 1
      %s35 = scalar_select %p32, %s33, %s34
      %p38 = pneg %p32
      %p39 = scmp.eq.s32.totalorder %s23, 2
      %p40 = por %p38, %p39
      %p41 = scmp.ne.s32.totalorder %s33, %s36
      %p42 = scmp.eq.s32.totalorder %s23, 0
      %p43 = por %p41, %p42
      %p44 = scmp.ne.s32.totalorder %s33, %s36
      %p45 = scmp.eq.s32.totalorder %s28, 2
      %p46 = por %p44, %p45
      %p47 = scmp.ne.s32.totalorder %s36, %s37
      %p48 = scmp.eq.s32.totalorder %s28, 0
      %p49 = por %p47, %p48
      %p50 = scmp.ne.s32.totalorder %s36, %s37
      %p51 = scmp.eq.s32.totalorder %s29, 2
      %p52 = por %p50, %p51
      %p54 = scmp.ne.s32.totalorder %s37, %s53
      %p55 = scmp.eq.s32.totalorder %s29, 0
      %p56 = por %p54, %p55
      %s58 = sadd.s32 %s57, 1
      %p61 = scmp.eq.s32.totalorder %s23, 2
      %p62 = scmp.ne.s32.totalorder %s57, %s59
      %p63 = scmp.eq.s32.totalorder %s23, 0
      %p64 = por %p62, %p63
      %p65 = scmp.ne.s32.totalorder %s57, %s59
      %p66 = scmp.eq.s32.totalorder %s28, 2
      %p67 = por %p65, %p66
      %p68 = scmp.ne.s32.totalorder %s59, %s60
      %p69 = scmp.eq.s32.totalorder %s28, 0
      %p70 = por %p68, %p69
      %p71 = scmp.ne.s32.totalorder %s59, %s60
      %p72 = scmp.eq.s32.totalorder %s29, 2
      %p73 = por %p71, %p72
      %p75 = scmp.ne.s32.totalorder %s60, %s74
      %p76 = scmp.eq.s32.totalorder %s29, 0
      %p77 = por %p75, %p76
      %s79 = sadd.s32 %s78, 1
      %p82 = scmp.eq.s32.totalorder %s23, 2
      %p83 = scmp.ne.s32.totalorder %s78, %s80
      %p84 = scmp.eq.s32.totalorder %s23, 0
      %p85 = por %p83, %p84
      %p86 = scmp.ne.s32.totalorder %s78, %s80
      %p87 = scmp.eq.s32.totalorder %s28, 2
      %p88 = por %p86, %p87
      %p89 = scmp.ne.s32.totalorder %s80, %s81
      %p90 = scmp.eq.s32.totalorder %s28, 0
      %p91 = por %p89, %p90
      %p92 = scmp.ne.s32.totalorder %s80, %s81
      %p93 = scmp.eq.s32.totalorder %s29, 2
      %p94 = por %p92, %p93
      %p96 = scmp.ne.s32.totalorder %s81, %s95
      %p97 = scmp.eq.s32.totalorder %s29, 0
      %p98 = por %p96, %p97
      %s100 = sadd.s32 %s99, 1
      %p103 = scmp.eq.s32.totalorder %s23, 2
      %p104 = scmp.ne.s32.totalorder %s99, %s101
      %p105 = scmp.eq.s32.totalorder %s23, 0
      %p106 = por %p104, %p105
      %p107 = scmp.ne.s32.totalorder %s99, %s101
      %p108 = scmp.eq.s32.totalorder %s28, 2
      %p109 = por %p107, %p108
      %p110 = scmp.ne.s32.totalorder %s101, %s102
      %p111 = scmp.eq.s32.totalorder %s28, 0
      %p112 = por %p110, %p111
      %p113 = scmp.ne.s32.totalorder %s101, %s102
      %p114 = scmp.eq.s32.totalorder %s29, 2
      %p115 = por %p113, %p114
      %p117 = scmp.ne.s32.totalorder %s102, %s116
      %p118 = scmp.eq.s32.totalorder %s29, 0
      %p119 = por %p117, %p118
      %s121 = sadd.s32 %s120, 1
      %p124 = scmp.eq.s32.totalorder %s23, 2
      %p125 = scmp.ne.s32.totalorder %s120, %s122
      %p126 = scmp.eq.s32.totalorder %s23, 0
      %p127 = por %p125, %p126
      %p128 = scmp.ne.s32.totalorder %s120, %s122
      %p129 = scmp.eq.s32.totalorder %s28, 2
      %p130 = por %p128, %p129
      %p131 = scmp.ne.s32.totalorder %s122, %s123
      %p132 = scmp.eq.s32.totalorder %s28, 0
      %p133 = por %p131, %p132
      %p134 = scmp.ne.s32.totalorder %s122, %s123
      %p135 = scmp.eq.s32.totalorder %s29, 2
      %p136 = por %p134, %p135
      %p138 = scmp.ne.s32.totalorder %s123, %s137
      %p139 = scmp.eq.s32.totalorder %s29, 0
      %p140 = por %p138, %p139
      %s142 = sadd.s32 %s141, 1
      %p145 = scmp.eq.s32.totalorder %s23, 2
      %p146 = scmp.ne.s32.totalorder %s141, %s143
      %p147 = scmp.eq.s32.totalorder %s23, 0
      %p148 = por %p146, %p147
      %p149 = scmp.ne.s32.totalorder %s141, %s143
      %p150 = scmp.eq.s32.totalorder %s28, 2
      %p151 = por %p149, %p150
      %p152 = scmp.ne.s32.totalorder %s143, %s144
      %p153 = scmp.eq.s32.totalorder %s28, 0
      %p154 = por %p152, %p153
      %p155 = scmp.ne.s32.totalorder %s143, %s144
      %p156 = scmp.eq.s32.totalorder %s29, 2
      %p157 = por %p155, %p156
      %p159 = scmp.ne.s32.totalorder %s144, %s158
      %p160 = scmp.eq.s32.totalorder %s29, 0
      %p161 = por %p159, %p160
      %s163 = sadd.s32 %s162, 1
      %p166 = scmp.eq.s32.totalorder %s23, 2
      %p167 = scmp.ne.s32.totalorder %s162, %s164
      %p168 = scmp.eq.s32.totalorder %s23, 0
      %p169 = por %p167, %p168
      %p170 = scmp.ne.s32.totalorder %s162, %s164
      %p171 = scmp.eq.s32.totalorder %s28, 2
      %p172 = por %p170, %p171
      %p173 = scmp.ne.s32.totalorder %s164, %s165
      %p174 = scmp.eq.s32.totalorder %s28, 0
      %p175 = por %p173, %p174
      %p176 = scmp.ne.s32.totalorder %s164, %s165
      %p177 = scmp.eq.s32.totalorder %s29, 2
      %p178 = por %p176, %p177
      %p180 = scmp.ne.s32.totalorder %s165, %s179
      %p181 = scmp.eq.s32.totalorder %s29, 0
      %p182 = por %p180, %p181
      %s184 = sadd.s32 %s183, 1
      %p187 = scmp.eq.s32.totalorder %s23, 2
      %p188 = scmp.ne.s32.totalorder %s183, %s185
      %p189 = scmp.eq.s32.totalorder %s23, 0
      %p190 = por %p188, %p189
      %p191 = scmp.ne.s32.totalorder %s183, %s185
      %p192 = scmp.eq.s32.totalorder %s28, 2
      %p193 = por %p191, %p192
      %p194 = scmp.ne.s32.totalorder %s185, %s186
      %p195 = scmp.eq.s32.totalorder %s28, 0
      %p196 = por %p194, %p195
      %p197 = scmp.ne.s32.totalorder %s185, %s186
      %p198 = scmp.eq.s32.totalorder %s29, 2
      %p199 = por %p197, %p198
      %p201 = scmp.ne.s32.totalorder %s186, %s200
      %p202 = scmp.eq.s32.totalorder %s29, 0
      %p203 = por %p201, %p202
      %s205 = sadd.s32 %s204, 1
      %p208 = scmp.eq.s32.totalorder %s23, 2
      %p209 = scmp.ne.s32.totalorder %s204, %s206
      %p210 = scmp.eq.s32.totalorder %s23, 0
      %p211 = por %p209, %p210
      %p212 = scmp.ne.s32.totalorder %s204, %s206
      %p213 = scmp.eq.s32.totalorder %s28, 2
      %p214 = por %p212, %p213
      %p215 = scmp.ne.s32.totalorder %s206, %s207
      %p216 = scmp.eq.s32.totalorder %s28, 0
      %p217 = por %p215, %p216
      %p218 = scmp.ne.s32.totalorder %s206, %s207
      %p219 = scmp.eq.s32.totalorder %s29, 2
      %p220 = por %p218, %p219
      %p222 = scmp.ne.s32.totalorder %s207, %s221
      %p223 = scmp.eq.s32.totalorder %s29, 0
      %p224 = por %p222, %p223
      %s226 = sadd.s32 %s225, 1
      %p229 = scmp.eq.s32.totalorder %s23, 2
      %p230 = scmp.ne.s32.totalorder %s225, %s227
      %p231 = scmp.eq.s32.totalorder %s23, 0
      %p232 = por %p230, %p231
      %p233 = scmp.ne.s32.totalorder %s225, %s227
      %p234 = scmp.eq.s32.totalorder %s28, 2
      %p235 = por %p233, %p234
      %p236 = scmp.ne.s32.totalorder %s227, %s228
      %p237 = scmp.eq.s32.totalorder %s28, 0
      %p238 = por %p236, %p237
      %p239 = scmp.ne.s32.totalorder %s227, %s228
      %p240 = scmp.eq.s32.totalorder %s29, 2
      %p241 = por %p239, %p240
      %p243 = scmp.ne.s32.totalorder %s228, %s242
      %p244 = scmp.eq.s32.totalorder %s29, 0
      %p245 = por %p243, %p244
      %s247 = sadd.s32 %s246, 1
      %p250 = scmp.eq.s32.totalorder %s23, 2
      %p251 = scmp.ne.s32.totalorder %s246, %s248
      %p252 = scmp.eq.s32.totalorder %s23, 0
      %p253 = por %p251, %p252
      %p254 = scmp.ne.s32.totalorder %s246, %s248
      %p255 = scmp.eq.s32.totalorder %s28, 2
      %p256 = por %p254, %p255
      %p257 = scmp.ne.s32.totalorder %s248, %s249
      %p258 = scmp.eq.s32.totalorder %s28, 0
      %p259 = por %p257, %p258
      %p260 = scmp.ne.s32.totalorder %s248, %s249
      %p261 = scmp.eq.s32.totalorder %s29, 2
      %p262 = por %p260, %p261
      %p264 = scmp.ne.s32.totalorder %s249, %s263
      %p265 = scmp.eq.s32.totalorder %s29, 0
      %p266 = por %p264, %p265
      %s267 = ssub.s32 %s23, %s30
      %p268 = scmp.eq.s32.totalorder %s267, 0
      %s270 = sadd.s32 %s269, 1
      %s271 = scalar_select %p268, %s269, %s270
      %p274 = pneg %p268
      %p275 = scmp.eq.s32.totalorder %s23, 2
      %p276 = por %p274, %p275
      %p277 = scmp.ne.s32.totalorder %s269, %s272
      %p278 = scmp.eq.s32.totalorder %s23, 0
      %p279 = por %p277, %p278
      %p280 = scmp.ne.s32.totalorder %s269, %s272
      %p281 = scmp.eq.s32.totalorder %s28, 2
      %p282 = por %p280, %p281
      %p283 = scmp.ne.s32.totalorder %s272, %s273
      %p284 = scmp.eq.s32.totalorder %s28, 0
      %p285 = por %p283, %p284
      %p286 = scmp.ne.s32.totalorder %s272, %s273
      %p287 = scmp.eq.s32.totalorder %s29, 2
      %p288 = por %p286, %p287
      %p290 = scmp.ne.s32.totalorder %s273, %s289
      %p291 = scmp.eq.s32.totalorder %s29, 0
      %p292 = por %p290, %p291
      %p293 = scmp.le.s32.totalorder 1, %s23
      %p294 = scmp.lt.s32.totalorder %s23, 4
      %p295 = pnand %p293, %p294
      %p296 = pneg %p295
      // Predicated region
      $region9: #{tpu_custom_call.1} parent=5 // pred_check
        _
      $region10: #{tpu_custom_call.1} parent=5 // pred_check_branch
        %298 = sbr.rel (%p295) target = $region12
      $region11: #{tpu_custom_call.1} parent=5 // pred_region
        %s299 = ssub.s32 %s23, 1
        // Predicated region
        $region13: #{tpu_custom_call.1} parent=11 // pred_check
          %p300 = pneg %p70
        $region14: #{tpu_custom_call.1} parent=11 // pred_check_branch
          %302 = sbr.rel (%p300) target = $region16
        $region15: #{tpu_custom_call.1} parent=11 // pred_region
          %s304 = ssub.s32 2048, 2048
          %305 = vsyncadd [#allocation3], %s304
          %s306 = sshll.u32 [#allocation2], 4
          %s307 = int_to_ptr.vmem [resolvable:$true] %s306
          %312 = dma.hbm_to_vmem [thread:$0]  %s1, 2048, %s307, [#allocation3], 512, 512, 32
        $region16: #{tpu_custom_call.1} parent=11 // pred_fallthru
          _
        // Predicated region
        $region17: #{tpu_custom_call.1} parent=11 // pred_check
          %p313 = pneg %p91
        $region18: #{tpu_custom_call.1} parent=11 // pred_check_branch
          %315 = sbr.rel (%p313) target = $region20
        $region19: #{tpu_custom_call.1} parent=11 // pred_region
          _
        $region20: #{tpu_custom_call.1} parent=11 // pred_fallthru
          _
        // Predicated region
        $region21: #{tpu_custom_call.1} parent=11 // pred_check
          %p316 = pneg %p112
        $region22: #{tpu_custom_call.1} parent=11 // pred_check_branch
          %318 = sbr.rel (%p316) target = $region24
        $region23: #{tpu_custom_call.1} parent=11 // pred_region
          %s320 = ssub.s32 8192, 8192
          %321 = vsyncadd [#allocation6], %s320
          %s322 = sshll.u32 [#allocation5], 4
          %s323 = int_to_ptr.vmem [resolvable:$true] %s322
          %328 = dma.hbm_to_vmem [thread:$0]  %s3, 8192, %s323, [#allocation6], 128, 128, 8
        $region24: #{tpu_custom_call.1} parent=11 // pred_fallthru
          _
        // Predicated region
        $region25: #{tpu_custom_call.1} parent=11 // pred_check
          %p329 = pneg %p133
        $region26: #{tpu_custom_call.1} parent=11 // pred_check_branch
          %331 = sbr.rel (%p329) target = $region28
        $region27: #{tpu_custom_call.1} parent=11 // pred_region
          _
        $region28: #{tpu_custom_call.1} parent=11 // pred_fallthru
          _
        // Predicated region
        $region29: #{tpu_custom_call.1} parent=11 // pred_check
          %p332 = pneg %p154
        $region30: #{tpu_custom_call.1} parent=11 // pred_check_branch
          %334 = sbr.rel (%p332) target = $region32
        $region31: #{tpu_custom_call.1} parent=11 // pred_region
          %s336 = ssub.s32 8192, 8192
          %337 = vsyncadd [#allocation6], %s336
          %s338 = sshll.u32 [#allocation7], 4
          %s339 = int_to_ptr.vmem [resolvable:$true] %s338
          %344 = dma.hbm_to_vmem [thread:$0]  %s5, 8192, %s339, [#allocation6], 128, 128, 8
        $region32: #{tpu_custom_call.1} parent=11 // pred_fallthru
          _
        // Predicated region
        $region33: #{tpu_custom_call.1} parent=11 // pred_check
          %p345 = pneg %p175
        $region34: #{tpu_custom_call.1} parent=11 // pred_check_branch
          %347 = sbr.rel (%p345) target = $region36
        $region35: #{tpu_custom_call.1} parent=11 // pred_region
          _
        $region36: #{tpu_custom_call.1} parent=11 // pred_fallthru
          _
        // Predicated region
        $region37: #{tpu_custom_call.1} parent=11 // pred_check
          %p348 = pneg %p196
        $region38: #{tpu_custom_call.1} parent=11 // pred_check_branch
          %350 = sbr.rel (%p348) target = $region40
        $region39: #{tpu_custom_call.1} parent=11 // pred_region
          %s352 = ssub.s32 2048, 2048
          %353 = vsyncadd [#allocation9], %s352
          %s354 = sshll.u32 [#allocation8], 4
          %s355 = int_to_ptr.vmem [resolvable:$true] %s354
          %360 = dma.hbm_to_vmem [thread:$0]  %s7, 2048, %s355, [#allocation9], 64, 64, 4
        $region40: #{tpu_custom_call.1} parent=11 // pred_fallthru
          _
        // Predicated region
        $region41: #{tpu_custom_call.1} parent=11 // pred_check
          %p361 = pneg %p217
        $region42: #{tpu_custom_call.1} parent=11 // pred_check_branch
          %363 = sbr.rel (%p361) target = $region44
        $region43: #{tpu_custom_call.1} parent=11 // pred_region
          _
        $region44: #{tpu_custom_call.1} parent=11 // pred_fallthru
          _
        // Predicated region
        $region45: #{tpu_custom_call.1} parent=11 // pred_check
          %p364 = pneg %p238
        $region46: #{tpu_custom_call.1} parent=11 // pred_check_branch
          %366 = sbr.rel (%p364) target = $region48
        $region47: #{tpu_custom_call.1} parent=11 // pred_region
          _
        $region48: #{tpu_custom_call.1} parent=11 // pred_fallthru
          _
        // Predicated region
        $region49: #{tpu_custom_call.1} parent=11 // pred_check
          %p367 = pneg %p259
        $region50: #{tpu_custom_call.1} parent=11 // pred_check_branch
          %369 = sbr.rel (%p367) target = $region52
        $region51: #{tpu_custom_call.1} parent=11 // pred_region
          _
        $region52: #{tpu_custom_call.1} parent=11 // pred_fallthru
          _
      $region12: #{tpu_custom_call.1} parent=5 // pred_fallthru
        _
      %p370 = scmp.lt.s32.totalorder %s23, 3
      // Predicated region
      $region53: #{tpu_custom_call.1} parent=5 // pred_check
        %p371 = pneg %p370
      $region54: #{tpu_custom_call.1} parent=5 // pred_check_branch
        %373 = sbr.rel (%p371) target = $region56
      $region55: #{tpu_custom_call.1} parent=5 // pred_region
        // Predicated region
        $region57: #{tpu_custom_call.1} parent=55 // pred_check
          %p374 = pneg %p43
        $region58: #{tpu_custom_call.1} parent=55 // pred_check_branch
          %376 = sbr.rel (%p374) target = $region60
        $region59: #{tpu_custom_call.1} parent=55 // pred_region
          %s377 = smul.u32 2, %s23
          %p378 = scmp.lt.s32.totalorder %s377, 5
          %s379 = scalar_select %p378, %s377, 5
          %s380 = smul.addr %s379, 8
          %s381 = scalar_lea.vmem %s0, %s380
          %s382 = smul.u32 2, %s23
        $region60: #{tpu_custom_call.1} parent=55 // pred_fallthru
          _
      $region56: #{tpu_custom_call.1} parent=5 // pred_fallthru
        _
      %p383 = scmp.le.s32.totalorder 1, %s23
      %p384 = scmp.lt.s32.totalorder %s23, 4
      %p385 = pnand %p383, %p384
      %p386 = pneg %p385
      // Predicated region
      $region61: #{tpu_custom_call.1} parent=5 // pred_check
        _
      $region62: #{tpu_custom_call.1} parent=5 // pred_check_branch
        %388 = sbr.rel (%p385) target = $region64
      $region63: #{tpu_custom_call.1} parent=5 // pred_region
        %s389 = ssub.s32 %s23, 1
        // Predicated region
        $region65: #{tpu_custom_call.1} parent=63 // pred_check
          %p390 = pneg %p70
        $region66: #{tpu_custom_call.1} parent=63 // pred_check_branch
          %392 = sbr.rel (%p390) target = $region68
        $region67: #{tpu_custom_call.1} parent=63 // pred_region
          %393 = dma.done [#allocation3], 2048
        $region68: #{tpu_custom_call.1} parent=63 // pred_fallthru
          _
        // Predicated region
        $region69: #{tpu_custom_call.1} parent=63 // pred_check
          %p394 = pneg %p112
        $region70: #{tpu_custom_call.1} parent=63 // pred_check_branch
          %396 = sbr.rel (%p394) target = $region72
        $region71: #{tpu_custom_call.1} parent=63 // pred_region
          %397 = dma.done [#allocation6], 8192
        $region72: #{tpu_custom_call.1} parent=63 // pred_fallthru
          _
        // Predicated region
        $region73: #{tpu_custom_call.1} parent=63 // pred_check
          %p398 = pneg %p154
        $region74: #{tpu_custom_call.1} parent=63 // pred_check_branch
          %400 = sbr.rel (%p398) target = $region76
        $region75: #{tpu_custom_call.1} parent=63 // pred_region
          %401 = dma.done [#allocation6], 8192
        $region76: #{tpu_custom_call.1} parent=63 // pred_fallthru
          _
        // Predicated region
        $region77: #{tpu_custom_call.1} parent=63 // pred_check
          %p402 = pneg %p196
        $region78: #{tpu_custom_call.1} parent=63 // pred_check_branch
          %404 = sbr.rel (%p402) target = $region80
        $region79: #{tpu_custom_call.1} parent=63 // pred_region
          %405 = dma.done [#allocation9], 2048
        $region80: #{tpu_custom_call.1} parent=63 // pred_fallthru
          _
        %s406 = smul.u32 2, %s28
        %p407 = scmp.lt.s32.totalorder %s406, 5
        %s408 = scalar_select %p407, %s406, 5
        %s409 = smul.addr %s408, 8
        %s410 = scalar_lea.vmem %s0, %s409
        %p411 = pneg %p49
        %p412 = pneg %p46
        %p413 = pneg %p70
        %p414 = pneg %p67
        %p415 = pneg %p91
        %p416 = pneg %p88
        %p417 = pneg %p112
        %p418 = pneg %p109
        %p419 = pneg %p133
        %p420 = pneg %p130
        %p421 = pneg %p154
        %p422 = pneg %p151
        %p423 = pneg %p175
        %p424 = pneg %p172
        %p425 = pneg %p196
        %p426 = pneg %p193
        %p427 = pneg %p217
        %p428 = pneg %p214
        %p429 = pneg %p238
        %p430 = pneg %p235
        %p431 = pneg %p259
        %p432 = pneg %p256
        %p433 = pneg %p285
        %p434 = pneg %p282
        %s435 = sand.u32 %s272, 1
        %s436 = scalar_lea.sflag [#allocation4], %s435
        %s437 = sand.u32 %s272, 1
        %s438 = smul.addr %s437, 16
        %s439 = scalar_lea.vmem [#allocation10], %s438
        %s440 = smul.u32 2, %s28
        %p441 = scmp.lt.s32.totalorder %s440, 5
        %s442 = scalar_select %p441, %s440, 5
        %s443 = smul.addr %s442, 8
        %s444 = scalar_lea.vmem %s0, %s443
        %s445 = smul.u32 2, %s28
        %s446 = smul.u32 2, %s28
        %v448 = vld [vmem:[%s444] sm:$0xff]
        %v449 = vld [vmem:[%s444 + $0x8] sm:$0xff]
        %v450 = vpack.c.bf16 %v449, %v448
        %v451 = vld [vmem:[#allocation2] sm:$0xff]
        %v452 = vld [vmem:[#allocation2 + $0x8] sm:$0xff]
        %v453 = vld [vmem:[#allocation2 + $0x10] sm:$0xff]
        %v454 = vld [vmem:[#allocation2 + $0x18] sm:$0xff]
        %v455 = vld [vmem:[#allocation2 + $0x20] sm:$0xff]
        %v456 = vld [vmem:[#allocation2 + $0x28] sm:$0xff]
        %v457 = vld [vmem:[#allocation2 + $0x30] sm:$0xff]
        %v458 = vld [vmem:[#allocation2 + $0x38] sm:$0xff]
        %v459 = vld [vmem:[#allocation2 + $0x40] sm:$0xff]
        %v460 = vld [vmem:[#allocation2 + $0x48] sm:$0xff]
        %v461 = vld [vmem:[#allocation2 + $0x50] sm:$0xff]
        %v462 = vld [vmem:[#allocation2 + $0x58] sm:$0xff]
        %v463 = vld [vmem:[#allocation2 + $0x60] sm:$0xff]
        %v464 = vld [vmem:[#allocation2 + $0x68] sm:$0xff]
        %v465 = vld [vmem:[#allocation2 + $0x70] sm:$0xff]
        %v466 = vld [vmem:[#allocation2 + $0x78] sm:$0xff]
        %v467 = vld [vmem:[%s2] sm:$0xff]
        %v469 = vlaneseq
        %v470 = vshrl.u32 %v469, 7
        %v471 = vsub.s32 0, %v470
        %v472 = vrot.slane %v467, %v471
        %v473 = vlaneseq
        %v474 = vshrl.u32 %v473, 7
        %v475 = vsub.s32 1, %v474
        %v476 = vrot.slane %v467, %v475
        %v477 = vlaneseq
        %v478 = vshrl.u32 %v477, 7
        %v479 = vsub.s32 2, %v478
        %v480 = vrot.slane %v467, %v479
        %v481 = vlaneseq
        %v482 = vshrl.u32 %v481, 7
        %v483 = vsub.s32 3, %v482
        %v484 = vrot.slane %v467, %v483
        %v485 = vlaneseq
        %v486 = vshrl.u32 %v485, 7
        %v487 = vsub.s32 4, %v486
        %v488 = vrot.slane %v467, %v487
        %v489 = vlaneseq
        %v490 = vshrl.u32 %v489, 7
        %v491 = vsub.s32 5, %v490
        %v492 = vrot.slane %v467, %v491
        %v493 = vlaneseq
        %v494 = vshrl.u32 %v493, 7
        %v495 = vsub.s32 6, %v494
        %v496 = vrot.slane %v467, %v495
        %v497 = vlaneseq
        %v498 = vshrl.u32 %v497, 7
        %v499 = vsub.s32 7, %v498
        %v500 = vrot.slane %v467, %v499
        %v525 = vunpack.c.l.b16 %v451
        %v526 = vunpack.c.h.b16 %v451
        %v527 = vunpack.c.l.b16 %v452
        %v528 = vunpack.c.h.b16 %v452
        %v529 = vunpack.c.l.b16 %v453
        %v530 = vunpack.c.h.b16 %v453
        %v531 = vunpack.c.l.b16 %v454
        %v532 = vunpack.c.h.b16 %v454
        %v533 = vunpack.c.l.b16 %v455
        %v534 = vunpack.c.h.b16 %v455
        %v535 = vunpack.c.l.b16 %v456
        %v536 = vunpack.c.h.b16 %v456
        %v537 = vunpack.c.l.b16 %v457
        %v538 = vunpack.c.h.b16 %v457
        %v539 = vunpack.c.l.b16 %v458
        %v540 = vunpack.c.h.b16 %v458
        %v541 = vunpack.c.l.b16 %v459
        %v542 = vunpack.c.h.b16 %v459
        %v543 = vunpack.c.l.b16 %v460
        %v544 = vunpack.c.h.b16 %v460
        %v545 = vunpack.c.l.b16 %v461
        %v546 = vunpack.c.h.b16 %v461
        %v547 = vunpack.c.l.b16 %v462
        %v548 = vunpack.c.h.b16 %v462
        %v549 = vunpack.c.l.b16 %v463
        %v550 = vunpack.c.h.b16 %v463
        %v551 = vunpack.c.l.b16 %v464
        %v552 = vunpack.c.h.b16 %v464
        %v553 = vunpack.c.l.b16 %v465
        %v554 = vunpack.c.h.b16 %v465
        %v555 = vunpack.c.l.b16 %v466
        %v556 = vunpack.c.h.b16 %v466
        %v557 = vpack.c.b16 %v533, %v525
        %v558 = vpack.c.b16 %v534, %v526
        %v559 = vpack.c.b16 %v535, %v527
        %v560 = vpack.c.b16 %v536, %v528
        %v561 = vpack.c.b16 %v537, %v529
        %v562 = vpack.c.b16 %v538, %v530
        %v563 = vpack.c.b16 %v539, %v531
        %v564 = vpack.c.b16 %v540, %v532
        %v565 = vpack.c.b16 %v549, %v541
        %v566 = vpack.c.b16 %v550, %v542
        %v567 = vpack.c.b16 %v551, %v543
        %v568 = vpack.c.b16 %v552, %v544
        %v569 = vpack.c.b16 %v553, %v545
        %v570 = vpack.c.b16 %v554, %v546
        %v571 = vpack.c.b16 %v555, %v547
        %v572 = vpack.c.b16 %v556, %v548
        %vm589 = vcmask 261120
        %v591 = vsel %vm589, %v450, 0
        %593 = vmatprep.subr.bf16.mxu0 %v558
        %594 = vmatpush1.bf16.msra.mxu0 %v557
        %595 = vmatprep.subr.bf16.mxu0 %v566
        %596 = vmatpush1.bf16.msra.mxu0 %v565
        %597 = vmatprep.subr.bf16.mxu0 0
        %598 = vmatpush1.bf16.msra.mxu0 0
        %599 = vmatprep.subr.bf16.mxu0 0
        %600 = vmatpush1.bf16.msra.mxu0 0
        %601 = vmatprep.subr.bf16.mxu0 0
        %602 = vmatpush1.bf16.msra.mxu0 0
        %603 = vmatprep.subr.bf16.mxu0 0
        %604 = vmatpush1.bf16.msra.mxu0 0
        %605 = vmatprep.subr.bf16.mxu0 0
        %606 = vmatpush1.bf16.msra.mxu0 0
        %607 = vmatprep.subr.bf16.mxu0 0
        %608 = vmatpush1.bf16.msra.mxu0 0
        %609 = vmatprep.subr.bf16.mxu0 0
        %610 = vmatpush1.bf16.msra.mxu0 0
        %611 = vmatprep.subr.bf16.mxu0 0
        %612 = vmatpush1.bf16.msra.mxu0 0
        %613 = vmatprep.subr.bf16.mxu0 0
        %614 = vmatpush1.bf16.msra.mxu0 0
        %615 = vmatprep.subr.bf16.mxu0 0
        %616 = vmatpush1.bf16.msra.mxu0 0
        %617 = vmatprep.subr.bf16.mxu0 0
        %618 = vmatpush1.bf16.msra.mxu0 0
        %619 = vmatprep.subr.bf16.mxu0 0
        %620 = vmatpush1.bf16.msra.mxu0 0
        %621 = vmatprep.subr.bf16.mxu0 0
        %622 = vmatpush1.bf16.msra.mxu0 0
        %623 = vmatprep.subr.bf16.mxu0 0
        %624 = vmatpush1.bf16.msra.mxu0 0
        %625 = vmatprep.mubr.bf16.mxu0 0
        %626 = vmatmul.mubr.bf16.gmra.mrb[0].mxu0 %v591
        %v627 = vpop.f32.mrb[0].mxu0
        %v628 = vadd.f32 %v472, %v627
        %v629 = vpop.f32.mrb[0].mxu0
        %v630 = vadd.f32 %v476, %v629
        %v631 = vpop.f32.mrb[0].mxu0
        %v632 = vadd.f32 %v472, %v631
        %v633 = vpop.f32.mrb[0].mxu0
        %v634 = vadd.f32 %v476, %v633
        %635 = vdwg.mxu0
        %636 = vmatprep.subr.bf16.mxu0 %v560
        %637 = vmatpush1.bf16.msra.mxu0 %v559
        %638 = vmatprep.subr.bf16.mxu0 %v568
        %639 = vmatpush1.bf16.msra.mxu0 %v567
        %640 = vmatprep.subr.bf16.mxu0 0
        %641 = vmatpush1.bf16.msra.mxu0 0
        %642 = vmatprep.subr.bf16.mxu0 0
        %643 = vmatpush1.bf16.msra.mxu0 0
        %644 = vmatprep.subr.bf16.mxu0 0
        %645 = vmatpush1.bf16.msra.mxu0 0
        %646 = vmatprep.subr.bf16.mxu0 0
        %647 = vmatpush1.bf16.msra.mxu0 0
        %648 = vmatprep.subr.bf16.mxu0 0
        %649 = vmatpush1.bf16.msra.mxu0 0
        %650 = vmatprep.subr.bf16.mxu0 0
        %651 = vmatpush1.bf16.msra.mxu0 0
        %652 = vmatprep.subr.bf16.mxu0 0
        %653 = vmatpush1.bf16.msra.mxu0 0
        %654 = vmatprep.subr.bf16.mxu0 0
        %655 = vmatpush1.bf16.msra.mxu0 0
        %656 = vmatprep.subr.bf16.mxu0 0
        %657 = vmatpush1.bf16.msra.mxu0 0
        %658 = vmatprep.subr.bf16.mxu0 0
        %659 = vmatpush1.bf16.msra.mxu0 0
        %660 = vmatprep.subr.bf16.mxu0 0
        %661 = vmatpush1.bf16.msra.mxu0 0
        %662 = vmatprep.subr.bf16.mxu0 0
        %663 = vmatpush1.bf16.msra.mxu0 0
        %664 = vmatprep.subr.bf16.mxu0 0
        %665 = vmatpush1.bf16.msra.mxu0 0
        %666 = vmatprep.subr.bf16.mxu0 0
        %667 = vmatpush1.bf16.msra.mxu0 0
        %668 = vmatprep.mubr.bf16.mxu0 0
        %669 = vmatmul.mubr.bf16.gmra.mrb[0].mxu0 %v591
        %v670 = vpop.f32.mrb[0].mxu0
        %v671 = vadd.f32 %v480, %v670
        %v672 = vpop.f32.mrb[0].mxu0
        %v673 = vadd.f32 %v484, %v672
        %v674 = vpop.f32.mrb[0].mxu0
        %v675 = vadd.f32 %v480, %v674
        %v676 = vpop.f32.mrb[0].mxu0
        %v677 = vadd.f32 %v484, %v676
        %678 = vdwg.mxu0
        %679 = vmatprep.subr.bf16.mxu0 %v562
        %680 = vmatpush1.bf16.msra.mxu0 %v561
        %681 = vmatprep.subr.bf16.mxu0 %v570
        %682 = vmatpush1.bf16.msra.mxu0 %v569
        %683 = vmatprep.subr.bf16.mxu0 0
        %684 = vmatpush1.bf16.msra.mxu0 0
        %685 = vmatprep.subr.bf16.mxu0 0
        %686 = vmatpush1.bf16.msra.mxu0 0
        %687 = vmatprep.subr.bf16.mxu0 0
        %688 = vmatpush1.bf16.msra.mxu0 0
        %689 = vmatprep.subr.bf16.mxu0 0
        %690 = vmatpush1.bf16.msra.mxu0 0
        %691 = vmatprep.subr.bf16.mxu0 0
        %692 = vmatpush1.bf16.msra.mxu0 0
        %693 = vmatprep.subr.bf16.mxu0 0
        %694 = vmatpush1.bf16.msra.mxu0 0
        %695 = vmatprep.subr.bf16.mxu0 0
        %696 = vmatpush1.bf16.msra.mxu0 0
        %697 = vmatprep.subr.bf16.mxu0 0
        %698 = vmatpush1.bf16.msra.mxu0 0
        %699 = vmatprep.subr.bf16.mxu0 0
        %700 = vmatpush1.bf16.msra.mxu0 0
        %701 = vmatprep.subr.bf16.mxu0 0
        %702 = vmatpush1.bf16.msra.mxu0 0
        %703 = vmatprep.subr.bf16.mxu0 0
        %704 = vmatpush1.bf16.msra.mxu0 0
        %705 = vmatprep.subr.bf16.mxu0 0
        %706 = vmatpush1.bf16.msra.mxu0 0
        %707 = vmatprep.subr.bf16.mxu0 0
        %708 = vmatpush1.bf16.msra.mxu0 0
        %709 = vmatprep.subr.bf16.mxu0 0
        %710 = vmatpush1.bf16.msra.mxu0 0
        %711 = vmatprep.mubr.bf16.mxu0 0
        %712 = vmatmul.mubr.bf16.gmra.mrb[0].mxu0 %v591
        %v713 = vpop.f32.mrb[0].mxu0
        %v714 = vadd.f32 %v488, %v713
        %v715 = vpop.f32.mrb[0].mxu0
        %v716 = vadd.f32 %v492, %v715
        %v717 = vpop.f32.mrb[0].mxu0
        %v718 = vadd.f32 %v488, %v717
        %v719 = vpop.f32.mrb[0].mxu0
        %v720 = vadd.f32 %v492, %v719
        %721 = vdwg.mxu0
        %722 = vmatprep.subr.bf16.mxu0 %v564
        %723 = vmatpush1.bf16.msra.mxu0 %v563
        %724 = vmatprep.subr.bf16.mxu0 %v572
        %725 = vmatpush1.bf16.msra.mxu0 %v571
        %726 = vmatprep.subr.bf16.mxu0 0
        %727 = vmatpush1.bf16.msra.mxu0 0
        %728 = vmatprep.subr.bf16.mxu0 0
        %729 = vmatpush1.bf16.msra.mxu0 0
        %730 = vmatprep.subr.bf16.mxu0 0
        %731 = vmatpush1.bf16.msra.mxu0 0
        %732 = vmatprep.subr.bf16.mxu0 0
        %733 = vmatpush1.bf16.msra.mxu0 0
        %734 = vmatprep.subr.bf16.mxu0 0
        %735 = vmatpush1.bf16.msra.mxu0 0
        %736 = vmatprep.subr.bf16.mxu0 0
        %737 = vmatpush1.bf16.msra.mxu0 0
        %738 = vmatprep.subr.bf16.mxu0 0
        %739 = vmatpush1.bf16.msra.mxu0 0
        %740 = vmatprep.subr.bf16.mxu0 0
        %741 = vmatpush1.bf16.msra.mxu0 0
        %742 = vmatprep.subr.bf16.mxu0 0
        %743 = vmatpush1.bf16.msra.mxu0 0
        %744 = vmatprep.subr.bf16.mxu0 0
        %745 = vmatpush1.bf16.msra.mxu0 0
        %746 = vmatprep.subr.bf16.mxu0 0
        %747 = vmatpush1.bf16.msra.mxu0 0
        %748 = vmatprep.subr.bf16.mxu0 0
        %749 = vmatpush1.bf16.msra.mxu0 0
        %750 = vmatprep.subr.bf16.mxu0 0
        %751 = vmatpush1.bf16.msra.mxu0 0
        %752 = vmatprep.subr.bf16.mxu0 0
        %753 = vmatpush1.bf16.msra.mxu0 0
        %754 = vmatprep.mubr.bf16.mxu0 0
        %755 = vmatmul.mubr.bf16.gmra.mrb[0].mxu0 %v591
        %v756 = vpop.f32.mrb[0].mxu0
        %v757 = vadd.f32 %v496, %v756
        %v758 = vpop.f32.mrb[0].mxu0
        %v759 = vadd.f32 %v500, %v758
        %v760 = vpop.f32.mrb[0].mxu0
        %v761 = vadd.f32 %v496, %v760
        %v762 = vpop.f32.mrb[0].mxu0
        %v763 = vadd.f32 %v500, %v762
        %764 = vdwg.mxu0
        %v765 = vtanh.pop %v628
        %v766 = vtanh.pop %v630
        %v767 = vtanh.pop %v671
        %v768 = vtanh.pop %v673
        %v769 = vtanh.pop %v714
        %v770 = vtanh.pop %v716
        %v771 = vtanh.pop %v757
        %v772 = vtanh.pop %v759
        %v773 = vtanh.pop %v632
        %v774 = vtanh.pop %v634
        %v775 = vtanh.pop %v675
        %v776 = vtanh.pop %v677
        %v777 = vtanh.pop %v718
        %v778 = vtanh.pop %v720
        %v779 = vtanh.pop %v761
        %v780 = vtanh.pop %v763
        %v781 = vpack.c.bf16 %v773, %v765
        %v782 = vpack.c.bf16 %v774, %v766
        %v783 = vpack.c.bf16 %v775, %v767
        %v784 = vpack.c.bf16 %v776, %v768
        %v785 = vpack.c.bf16 %v777, %v769
        %v786 = vpack.c.bf16 %v778, %v770
        %v787 = vpack.c.bf16 %v779, %v771
        %v788 = vpack.c.bf16 %v780, %v772
        %v789 = vld [vmem:[#allocation5] sm:$0xff]
        %v790 = vld [vmem:[#allocation5 + $0x8] sm:$0xff]
        %v791 = vld [vmem:[#allocation5 + $0x10] sm:$0xff]
        %v792 = vld [vmem:[#allocation5 + $0x18] sm:$0xff]
        %v793 = vld [vmem:[#allocation5 + $0x20] sm:$0xff]
        %v794 = vld [vmem:[#allocation5 + $0x28] sm:$0xff]
        %v795 = vld [vmem:[#allocation5 + $0x30] sm:$0xff]
        %v796 = vld [vmem:[#allocation5 + $0x38] sm:$0xff]
        %v797 = vld [vmem:[#allocation5 + $0x40] sm:$0xff]
        %v798 = vld [vmem:[#allocation5 + $0x48] sm:$0xff]
        %v799 = vld [vmem:[#allocation5 + $0x50] sm:$0xff]
        %v800 = vld [vmem:[#allocation5 + $0x58] sm:$0xff]
        %v801 = vld [vmem:[#allocation5 + $0x60] sm:$0xff]
        %v802 = vld [vmem:[#allocation5 + $0x68] sm:$0xff]
        %v803 = vld [vmem:[#allocation5 + $0x70] sm:$0xff]
        %v804 = vld [vmem:[#allocation5 + $0x78] sm:$0xff]
        %v805 = vld [vmem:[#allocation5 + $0x80] sm:$0xff]
        %v806 = vld [vmem:[#allocation5 + $0x88] sm:$0xff]
        %v807 = vld [vmem:[#allocation5 + $0x90] sm:$0xff]
        %v808 = vld [vmem:[#allocation5 + $0x98] sm:$0xff]
        %v809 = vld [vmem:[#allocation5 + $0xa0] sm:$0xff]
        %v810 = vld [vmem:[#allocation5 + $0xa8] sm:$0xff]
        %v811 = vld [vmem:[#allocation5 + $0xb0] sm:$0xff]
        %v812 = vld [vmem:[#allocation5 + $0xb8] sm:$0xff]
        %v813 = vld [vmem:[#allocation5 + $0xc0] sm:$0xff]
        %v814 = vld [vmem:[#allocation5 + $0xc8] sm:$0xff]
        %v815 = vld [vmem:[#allocation5 + $0xd0] sm:$0xff]
        %v816 = vld [vmem:[#allocation5 + $0xd8] sm:$0xff]
        %v817 = vld [vmem:[#allocation5 + $0xe0] sm:$0xff]
        %v818 = vld [vmem:[#allocation5 + $0xe8] sm:$0xff]
        %v819 = vld [vmem:[#allocation5 + $0xf0] sm:$0xff]
        %v820 = vld [vmem:[#allocation5 + $0xf8] sm:$0xff]
        %v821 = vld [vmem:[#allocation5 + $0x100] sm:$0xff]
        %v822 = vld [vmem:[#allocation5 + $0x108] sm:$0xff]
        %v823 = vld [vmem:[#allocation5 + $0x110] sm:$0xff]
        %v824 = vld [vmem:[#allocation5 + $0x118] sm:$0xff]
        %v825 = vld [vmem:[#allocation5 + $0x120] sm:$0xff]
        %v826 = vld [vmem:[#allocation5 + $0x128] sm:$0xff]
        %v827 = vld [vmem:[#allocation5 + $0x130] sm:$0xff]
        %v828 = vld [vmem:[#allocation5 + $0x138] sm:$0xff]
        %v829 = vld [vmem:[#allocation5 + $0x140] sm:$0xff]
        %v830 = vld [vmem:[#allocation5 + $0x148] sm:$0xff]
        %v831 = vld [vmem:[#allocation5 + $0x150] sm:$0xff]
        %v832 = vld [vmem:[#allocation5 + $0x158] sm:$0xff]
        %v833 = vld [vmem:[#allocation5 + $0x160] sm:$0xff]
        %v834 = vld [vmem:[#allocation5 + $0x168] sm:$0xff]
        %v835 = vld [vmem:[#allocation5 + $0x170] sm:$0xff]
        %v836 = vld [vmem:[#allocation5 + $0x178] sm:$0xff]
        %v837 = vld [vmem:[#allocation5 + $0x180] sm:$0xff]
        %v838 = vld [vmem:[#allocation5 + $0x188] sm:$0xff]
        %v839 = vld [vmem:[#allocation5 + $0x190] sm:$0xff]
        %v840 = vld [vmem:[#allocation5 + $0x198] sm:$0xff]
        %v841 = vld [vmem:[#allocation5 + $0x1a0] sm:$0xff]
        %v842 = vld [vmem:[#allocation5 + $0x1a8] sm:$0xff]
        %v843 = vld [vmem:[#allocation5 + $0x1b0] sm:$0xff]
        %v844 = vld [vmem:[#allocation5 + $0x1b8] sm:$0xff]
        %v845 = vld [vmem:[#allocation5 + $0x1c0] sm:$0xff]
        %v846 = vld [vmem:[#allocation5 + $0x1c8] sm:$0xff]
        %v847 = vld [vmem:[#allocation5 + $0x1d0] sm:$0xff]
        %v848 = vld [vmem:[#allocation5 + $0x1d8] sm:$0xff]
        %v849 = vld [vmem:[#allocation5 + $0x1e0] sm:$0xff]
        %v850 = vld [vmem:[#allocation5 + $0x1e8] sm:$0xff]
        %v851 = vld [vmem:[#allocation5 + $0x1f0] sm:$0xff]
        %v852 = vld [vmem:[#allocation5 + $0x1f8] sm:$0xff]
        %v853 = vld [vmem:[%s4] sm:$0x3]
        %v855 = vlaneseq
        %v856 = vshrl.u32 %v855, 7
        %v857 = vsub.s32 0, %v856
        %v858 = vrot.slane %v853, %v857
        %v859 = vlaneseq
        %v860 = vshrl.u32 %v859, 7
        %v861 = vsub.s32 1, %v860
        %v862 = vrot.slane %v853, %v861
        %v929 = vunpack.c.l.b16 %v789
        %v930 = vunpack.c.h.b16 %v789
        %v931 = vunpack.c.l.b16 %v790
        %v932 = vunpack.c.h.b16 %v790
        %v933 = vunpack.c.l.b16 %v791
        %v934 = vunpack.c.h.b16 %v791
        %v935 = vunpack.c.l.b16 %v792
        %v936 = vunpack.c.h.b16 %v792
        %v937 = vunpack.c.l.b16 %v793
        %v938 = vunpack.c.h.b16 %v793
        %v939 = vunpack.c.l.b16 %v794
        %v940 = vunpack.c.h.b16 %v794
        %v941 = vunpack.c.l.b16 %v795
        %v942 = vunpack.c.h.b16 %v795
        %v943 = vunpack.c.l.b16 %v796
        %v944 = vunpack.c.h.b16 %v796
        %v945 = vunpack.c.l.b16 %v797
        %v946 = vunpack.c.h.b16 %v797
        %v947 = vunpack.c.l.b16 %v798
        %v948 = vunpack.c.h.b16 %v798
        %v949 = vunpack.c.l.b16 %v799
        %v950 = vunpack.c.h.b16 %v799
        %v951 = vunpack.c.l.b16 %v800
        %v952 = vunpack.c.h.b16 %v800
        %v953 = vunpack.c.l.b16 %v801
        %v954 = vunpack.c.h.b16 %v801
        %v955 = vunpack.c.l.b16 %v802
        %v956 = vunpack.c.h.b16 %v802
        %v957 = vunpack.c.l.b16 %v803
        %v958 = vunpack.c.h.b16 %v803
        %v959 = vunpack.c.l.b16 %v804
        %v960 = vunpack.c.h.b16 %v804
        %v961 = vunpack.c.l.b16 %v805
        %v962 = vunpack.c.h.b16 %v805
        %v963 = vunpack.c.l.b16 %v806
        %v964 = vunpack.c.h.b16 %v806
        %v965 = vunpack.c.l.b16 %v807
        %v966 = vunpack.c.h.b16 %v807
        %v967 = vunpack.c.l.b16 %v808
        %v968 = vunpack.c.h.b16 %v808
        %v969 = vunpack.c.l.b16 %v809
        %v970 = vunpack.c.h.b16 %v809
        %v971 = vunpack.c.l.b16 %v810
        %v972 = vunpack.c.h.b16 %v810
        %v973 = vunpack.c.l.b16 %v811
        %v974 = vunpack.c.h.b16 %v811
        %v975 = vunpack.c.l.b16 %v812
        %v976 = vunpack.c.h.b16 %v812
        %v977 = vunpack.c.l.b16 %v813
        %v978 = vunpack.c.h.b16 %v813
        %v979 = vunpack.c.l.b16 %v814
        %v980 = vunpack.c.h.b16 %v814
        %v981 = vunpack.c.l.b16 %v815
        %v982 = vunpack.c.h.b16 %v815
        %v983 = vunpack.c.l.b16 %v816
        %v984 = vunpack.c.h.b16 %v816
        %v985 = vunpack.c.l.b16 %v817
        %v986 = vunpack.c.h.b16 %v817
        %v987 = vunpack.c.l.b16 %v818
        %v988 = vunpack.c.h.b16 %v818
        %v989 = vunpack.c.l.b16 %v819
        %v990 = vunpack.c.h.b16 %v819
        %v991 = vunpack.c.l.b16 %v820
        %v992 = vunpack.c.h.b16 %v820
        %v993 = vunpack.c.l.b16 %v821
        %v994 = vunpack.c.h.b16 %v821
        %v995 = vunpack.c.l.b16 %v822
        %v996 = vunpack.c.h.b16 %v822
        %v997 = vunpack.c.l.b16 %v823
        %v998 = vunpack.c.h.b16 %v823
        %v999 = vunpack.c.l.b16 %v824
        %v1000 = vunpack.c.h.b16 %v824
        %v1001 = vunpack.c.l.b16 %v825
        %v1002 = vunpack.c.h.b16 %v825
        %v1003 = vunpack.c.l.b16 %v826
        %v1004 = vunpack.c.h.b16 %v826
        %v1005 = vunpack.c.l.b16 %v827
        %v1006 = vunpack.c.h.b16 %v827
        %v1007 = vunpack.c.l.b16 %v828
        %v1008 = vunpack.c.h.b16 %v828
        %v1009 = vunpack.c.l.b16 %v829
        %v1010 = vunpack.c.h.b16 %v829
        %v1011 = vunpack.c.l.b16 %v830
        %v1012 = vunpack.c.h.b16 %v830
        %v1013 = vunpack.c.l.b16 %v831
        %v1014 = vunpack.c.h.b16 %v831
        %v1015 = vunpack.c.l.b16 %v832
        %v1016 = vunpack.c.h.b16 %v832
        %v1017 = vunpack.c.l.b16 %v833
        %v1018 = vunpack.c.h.b16 %v833
        %v1019 = vunpack.c.l.b16 %v834
        %v1020 = vunpack.c.h.b16 %v834
        %v1021 = vunpack.c.l.b16 %v835
        %v1022 = vunpack.c.h.b16 %v835
        %v1023 = vunpack.c.l.b16 %v836
        %v1024 = vunpack.c.h.b16 %v836
        %v1025 = vunpack.c.l.b16 %v837
        %v1026 = vunpack.c.h.b16 %v837
        %v1027 = vunpack.c.l.b16 %v838
        %v1028 = vunpack.c.h.b16 %v838
        %v1029 = vunpack.c.l.b16 %v839
        %v1030 = vunpack.c.h.b16 %v839
        %v1031 = vunpack.c.l.b16 %v840
        %v1032 = vunpack.c.h.b16 %v840
        %v1033 = vunpack.c.l.b16 %v841
        %v1034 = vunpack.c.h.b16 %v841
        %v1035 = vunpack.c.l.b16 %v842
        %v1036 = vunpack.c.h.b16 %v842
        %v1037 = vunpack.c.l.b16 %v843
        %v1038 = vunpack.c.h.b16 %v843
        %v1039 = vunpack.c.l.b16 %v844
        %v1040 = vunpack.c.h.b16 %v844
        %v1041 = vunpack.c.l.b16 %v845
        %v1042 = vunpack.c.h.b16 %v845
        %v1043 = vunpack.c.l.b16 %v846
        %v1044 = vunpack.c.h.b16 %v846
        %v1045 = vunpack.c.l.b16 %v847
        %v1046 = vunpack.c.h.b16 %v847
        %v1047 = vunpack.c.l.b16 %v848
        %v1048 = vunpack.c.h.b16 %v848
        %v1049 = vunpack.c.l.b16 %v849
        %v1050 = vunpack.c.h.b16 %v849
        %v1051 = vunpack.c.l.b16 %v850
        %v1052 = vunpack.c.h.b16 %v850
        %v1053 = vunpack.c.l.b16 %v851
        %v1054 = vunpack.c.h.b16 %v851
        %v1055 = vunpack.c.l.b16 %v852
        %v1056 = vunpack.c.h.b16 %v852
        %v1057 = vpack.c.b16 %v931, %v929
        %v1058 = vpack.c.b16 %v932, %v930
        %v1059 = vpack.c.b16 %v935, %v933
        %v1060 = vpack.c.b16 %v936, %v934
        %v1061 = vpack.c.b16 %v939, %v937
        %v1062 = vpack.c.b16 %v940, %v938
        %v1063 = vpack.c.b16 %v943, %v941
        %v1064 = vpack.c.b16 %v944, %v942
        %v1065 = vpack.c.b16 %v947, %v945
        %v1066 = vpack.c.b16 %v948, %v946
        %v1067 = vpack.c.b16 %v951, %v949
        %v1068 = vpack.c.b16 %v952, %v950
        %v1069 = vpack.c.b16 %v955, %v953
        %v1070 = vpack.c.b16 %v956, %v954
        %v1071 = vpack.c.b16 %v959, %v957
        %v1072 = vpack.c.b16 %v960, %v958
        %v1073 = vpack.c.b16 %v963, %v961
        %v1074 = vpack.c.b16 %v964, %v962
        %v1075 = vpack.c.b16 %v967, %v965
        %v1076 = vpack.c.b16 %v968, %v966
        %v1077 = vpack.c.b16 %v971, %v969
        %v1078 = vpack.c.b16 %v972, %v970
        %v1079 = vpack.c.b16 %v975, %v973
        %v1080 = vpack.c.b16 %v976, %v974
        %v1081 = vpack.c.b16 %v979, %v977
        %v1082 = vpack.c.b16 %v980, %v978
        %v1083 = vpack.c.b16 %v983, %v981
        %v1084 = vpack.c.b16 %v984, %v982
        %v1085 = vpack.c.b16 %v987, %v985
        %v1086 = vpack.c.b16 %v988, %v986
        %v1087 = vpack.c.b16 %v991, %v989
        %v1088 = vpack.c.b16 %v992, %v990
        %v1089 = vpack.c.b16 %v995, %v993
        %v1090 = vpack.c.b16 %v996, %v994
        %v1091 = vpack.c.b16 %v999, %v997
        %v1092 = vpack.c.b16 %v1000, %v998
        %v1093 = vpack.c.b16 %v1003, %v1001
        %v1094 = vpack.c.b16 %v1004, %v1002
        %v1095 = vpack.c.b16 %v1007, %v1005
        %v1096 = vpack.c.b16 %v1008, %v1006
        %v1097 = vpack.c.b16 %v1011, %v1009
        %v1098 = vpack.c.b16 %v1012, %v1010
        %v1099 = vpack.c.b16 %v1015, %v1013
        %v1100 = vpack.c.b16 %v1016, %v1014
        %v1101 = vpack.c.b16 %v1019, %v1017
        %v1102 = vpack.c.b16 %v1020, %v1018
        %v1103 = vpack.c.b16 %v1023, %v1021
        %v1104 = vpack.c.b16 %v1024, %v1022
        %v1105 = vpack.c.b16 %v1027, %v1025
        %v1106 = vpack.c.b16 %v1028, %v1026
        %v1107 = vpack.c.b16 %v1031, %v1029
        %v1108 = vpack.c.b16 %v1032, %v1030
        %v1109 = vpack.c.b16 %v1035, %v1033
        %v1110 = vpack.c.b16 %v1036, %v1034
        %v1111 = vpack.c.b16 %v1039, %v1037
        %v1112 = vpack.c.b16 %v1040, %v1038
        %v1113 = vpack.c.b16 %v1043, %v1041
        %v1114 = vpack.c.b16 %v1044, %v1042
        %v1115 = vpack.c.b16 %v1047, %v1045
        %v1116 = vpack.c.b16 %v1048, %v1046
        %v1117 = vpack.c.b16 %v1051, %v1049
        %v1118 = vpack.c.b16 %v1052, %v1050
        %v1119 = vpack.c.b16 %v1055, %v1053
        %v1120 = vpack.c.b16 %v1056, %v1054
        %1185 = vmatprep.subr.bf16.mxu0 %v1058
        %1186 = vmatpush1.bf16.msra.mxu0 %v1057
        %1187 = vmatprep.subr.bf16.mxu0 %v1060
        %1188 = vmatpush1.bf16.msra.mxu0 %v1059
        %1189 = vmatprep.subr.bf16.mxu0 %v1062
        %1190 = vmatpush1.bf16.msra.mxu0 %v1061
        %1191 = vmatprep.subr.bf16.mxu0 %v1064
        %1192 = vmatpush1.bf16.msra.mxu0 %v1063
        %1193 = vmatprep.subr.bf16.mxu0 %v1066
        %1194 = vmatpush1.bf16.msra.mxu0 %v1065
        %1195 = vmatprep.subr.bf16.mxu0 %v1068
        %1196 = vmatpush1.bf16.msra.mxu0 %v1067
        %1197 = vmatprep.subr.bf16.mxu0 %v1070
        %1198 = vmatpush1.bf16.msra.mxu0 %v1069
        %1199 = vmatprep.subr.bf16.mxu0 %v1072
        %1200 = vmatpush1.bf16.msra.mxu0 %v1071
        %1201 = vmatprep.subr.bf16.mxu0 %v1074
        %1202 = vmatpush1.bf16.msra.mxu0 %v1073
        %1203 = vmatprep.subr.bf16.mxu0 %v1076
        %1204 = vmatpush1.bf16.msra.mxu0 %v1075
        %1205 = vmatprep.subr.bf16.mxu0 %v1078
        %1206 = vmatpush1.bf16.msra.mxu0 %v1077
        %1207 = vmatprep.subr.bf16.mxu0 %v1080
        %1208 = vmatpush1.bf16.msra.mxu0 %v1079
        %1209 = vmatprep.subr.bf16.mxu0 %v1082
        %1210 = vmatpush1.bf16.msra.mxu0 %v1081
        %1211 = vmatprep.subr.bf16.mxu0 %v1084
        %1212 = vmatpush1.bf16.msra.mxu0 %v1083
        %1213 = vmatprep.subr.bf16.mxu0 %v1086
        %1214 = vmatpush1.bf16.msra.mxu0 %v1085
        %1215 = vmatprep.subr.bf16.mxu0 %v1088
        %1216 = vmatpush1.bf16.msra.mxu0 %v1087
        %1217 = vmatprep.mubr.bf16.mxu0 %v782
        %1218 = vmatmul.mubr.bf16.gmra.mrb[0].mxu0 %v781
        %v1219 = vpop.f32.mrb[0].mxu0
        %v1220 = vadd.f32 %v858, %v1219
        %v1221 = vpop.f32.mrb[0].mxu0
        %v1222 = vadd.f32 %v862, %v1221
        %v1223 = vpop.f32.mrb[0].mxu0
        %v1224 = vadd.f32 %v858, %v1223
        %v1225 = vpop.f32.mrb[0].mxu0
        %v1226 = vadd.f32 %v862, %v1225
        %1227 = vdwg.mxu0
        %1228 = vmatprep.subr.bf16.mxu0 %v1090
        %1229 = vmatpush1.bf16.msra.mxu0 %v1089
        %1230 = vmatprep.subr.bf16.mxu0 %v1092
        %1231 = vmatpush1.bf16.msra.mxu0 %v1091
        %1232 = vmatprep.subr.bf16.mxu0 %v1094
        %1233 = vmatpush1.bf16.msra.mxu0 %v1093
        %1234 = vmatprep.subr.bf16.mxu0 %v1096
        %1235 = vmatpush1.bf16.msra.mxu0 %v1095
        %1236 = vmatprep.subr.bf16.mxu0 %v1098
        %1237 = vmatpush1.bf16.msra.mxu0 %v1097
        %1238 = vmatprep.subr.bf16.mxu0 %v1100
        %1239 = vmatpush1.bf16.msra.mxu0 %v1099
        %1240 = vmatprep.subr.bf16.mxu0 %v1102
        %1241 = vmatpush1.bf16.msra.mxu0 %v1101
        %1242 = vmatprep.subr.bf16.mxu0 %v1104
        %1243 = vmatpush1.bf16.msra.mxu0 %v1103
        %1244 = vmatprep.subr.bf16.mxu0 %v1106
        %1245 = vmatpush1.bf16.msra.mxu0 %v1105
        %1246 = vmatprep.subr.bf16.mxu0 %v1108
        %1247 = vmatpush1.bf16.msra.mxu0 %v1107
        %1248 = vmatprep.subr.bf16.mxu0 %v1110
        %1249 = vmatpush1.bf16.msra.mxu0 %v1109
        %1250 = vmatprep.subr.bf16.mxu0 %v1112
        %1251 = vmatpush1.bf16.msra.mxu0 %v1111
        %1252 = vmatprep.subr.bf16.mxu0 %v1114
        %1253 = vmatpush1.bf16.msra.mxu0 %v1113
        %1254 = vmatprep.subr.bf16.mxu0 %v1116
        %1255 = vmatpush1.bf16.msra.mxu0 %v1115
        %1256 = vmatprep.subr.bf16.mxu0 %v1118
        %1257 = vmatpush1.bf16.msra.mxu0 %v1117
        %1258 = vmatprep.subr.bf16.mxu0 %v1120
        %1259 = vmatpush1.bf16.msra.mxu0 %v1119
        %1260 = vmatprep.mubr.bf16.mxu0 %v784
        %1261 = vmatmul.mubr.bf16.gmra.mrb[0].mxu0 %v783
        %v1262 = vpop.f32.mrb[0].mxu0
        %v1263 = vadd.f32 %v1220, %v1262
        %v1264 = vpop.f32.mrb[0].mxu0
        %v1265 = vadd.f32 %v1222, %v1264
        %v1266 = vpop.f32.mrb[0].mxu0
        %v1267 = vadd.f32 %v1224, %v1266
        %v1268 = vpop.f32.mrb[0].mxu0
        %v1269 = vadd.f32 %v1226, %v1268
        %1270 = vdwg.mxu0
        %v1271 = vtanh.pop %v1263
        %v1272 = vtanh.pop %v1265
        %v1273 = vtanh.pop %v1267
        %v1274 = vtanh.pop %v1269
        %v1275 = vld [vmem:[#allocation7] sm:$0xff]
        %v1276 = vld [vmem:[#allocation7 + $0x8] sm:$0xff]
        %v1277 = vld [vmem:[#allocation7 + $0x10] sm:$0xff]
        %v1278 = vld [vmem:[#allocation7 + $0x18] sm:$0xff]
        %v1279 = vld [vmem:[#allocation7 + $0x20] sm:$0xff]
        %v1280 = vld [vmem:[#allocation7 + $0x28] sm:$0xff]
        %v1281 = vld [vmem:[#allocation7 + $0x30] sm:$0xff]
        %v1282 = vld [vmem:[#allocation7 + $0x38] sm:$0xff]
        %v1283 = vld [vmem:[#allocation7 + $0x40] sm:$0xff]
        %v1284 = vld [vmem:[#allocation7 + $0x48] sm:$0xff]
        %v1285 = vld [vmem:[#allocation7 + $0x50] sm:$0xff]
        %v1286 = vld [vmem:[#allocation7 + $0x58] sm:$0xff]
        %v1287 = vld [vmem:[#allocation7 + $0x60] sm:$0xff]
        %v1288 = vld [vmem:[#allocation7 + $0x68] sm:$0xff]
        %v1289 = vld [vmem:[#allocation7 + $0x70] sm:$0xff]
        %v1290 = vld [vmem:[#allocation7 + $0x78] sm:$0xff]
        %v1291 = vld [vmem:[#allocation7 + $0x80] sm:$0xff]
        %v1292 = vld [vmem:[#allocation7 + $0x88] sm:$0xff]
        %v1293 = vld [vmem:[#allocation7 + $0x90] sm:$0xff]
        %v1294 = vld [vmem:[#allocation7 + $0x98] sm:$0xff]
        %v1295 = vld [vmem:[#allocation7 + $0xa0] sm:$0xff]
        %v1296 = vld [vmem:[#allocation7 + $0xa8] sm:$0xff]
        %v1297 = vld [vmem:[#allocation7 + $0xb0] sm:$0xff]
        %v1298 = vld [vmem:[#allocation7 + $0xb8] sm:$0xff]
        %v1299 = vld [vmem:[#allocation7 + $0xc0] sm:$0xff]
        %v1300 = vld [vmem:[#allocation7 + $0xc8] sm:$0xff]
        %v1301 = vld [vmem:[#allocation7 + $0xd0] sm:$0xff]
        %v1302 = vld [vmem:[#allocation7 + $0xd8] sm:$0xff]
        %v1303 = vld [vmem:[#allocation7 + $0xe0] sm:$0xff]
        %v1304 = vld [vmem:[#allocation7 + $0xe8] sm:$0xff]
        %v1305 = vld [vmem:[#allocation7 + $0xf0] sm:$0xff]
        %v1306 = vld [vmem:[#allocation7 + $0xf8] sm:$0xff]
        %v1307 = vld [vmem:[#allocation7 + $0x100] sm:$0xff]
        %v1308 = vld [vmem:[#allocation7 + $0x108] sm:$0xff]
        %v1309 = vld [vmem:[#allocation7 + $0x110] sm:$0xff]
        %v1310 = vld [vmem:[#allocation7 + $0x118] sm:$0xff]
        %v1311 = vld [vmem:[#allocation7 + $0x120] sm:$0xff]
        %v1312 = vld [vmem:[#allocation7 + $0x128] sm:$0xff]
        %v1313 = vld [vmem:[#allocation7 + $0x130] sm:$0xff]
        %v1314 = vld [vmem:[#allocation7 + $0x138] sm:$0xff]
        %v1315 = vld [vmem:[#allocation7 + $0x140] sm:$0xff]
        %v1316 = vld [vmem:[#allocation7 + $0x148] sm:$0xff]
        %v1317 = vld [vmem:[#allocation7 + $0x150] sm:$0xff]
        %v1318 = vld [vmem:[#allocation7 + $0x158] sm:$0xff]
        %v1319 = vld [vmem:[#allocation7 + $0x160] sm:$0xff]
        %v1320 = vld [vmem:[#allocation7 + $0x168] sm:$0xff]
        %v1321 = vld [vmem:[#allocation7 + $0x170] sm:$0xff]
        %v1322 = vld [vmem:[#allocation7 + $0x178] sm:$0xff]
        %v1323 = vld [vmem:[#allocation7 + $0x180] sm:$0xff]
        %v1324 = vld [vmem:[#allocation7 + $0x188] sm:$0xff]
        %v1325 = vld [vmem:[#allocation7 + $0x190] sm:$0xff]
        %v1326 = vld [vmem:[#allocation7 + $0x198] sm:$0xff]
        %v1327 = vld [vmem:[#allocation7 + $0x1a0] sm:$0xff]
        %v1328 = vld [vmem:[#allocation7 + $0x1a8] sm:$0xff]
        %v1329 = vld [vmem:[#allocation7 + $0x1b0] sm:$0xff]
        %v1330 = vld [vmem:[#allocation7 + $0x1b8] sm:$0xff]
        %v1331 = vld [vmem:[#allocation7 + $0x1c0] sm:$0xff]
        %v1332 = vld [vmem:[#allocation7 + $0x1c8] sm:$0xff]
        %v1333 = vld [vmem:[#allocation7 + $0x1d0] sm:$0xff]
        %v1334 = vld [vmem:[#allocation7 + $0x1d8] sm:$0xff]
        %v1335 = vld [vmem:[#allocation7 + $0x1e0] sm:$0xff]
        %v1336 = vld [vmem:[#allocation7 + $0x1e8] sm:$0xff]
        %v1337 = vld [vmem:[#allocation7 + $0x1f0] sm:$0xff]
        %v1338 = vld [vmem:[#allocation7 + $0x1f8] sm:$0xff]
        %v1339 = vld [vmem:[%s6] sm:$0x3]
        %v1341 = vlaneseq
        %v1342 = vshrl.u32 %v1341, 7
        %v1343 = vsub.s32 0, %v1342
        %v1344 = vrot.slane %v1339, %v1343
        %v1345 = vlaneseq
        %v1346 = vshrl.u32 %v1345, 7
        %v1347 = vsub.s32 1, %v1346
        %v1348 = vrot.slane %v1339, %v1347
        %v1415 = vunpack.c.l.b16 %v1275
        %v1416 = vunpack.c.h.b16 %v1275
        %v1417 = vunpack.c.l.b16 %v1276
        %v1418 = vunpack.c.h.b16 %v1276
        %v1419 = vunpack.c.l.b16 %v1277
        %v1420 = vunpack.c.h.b16 %v1277
        %v1421 = vunpack.c.l.b16 %v1278
        %v1422 = vunpack.c.h.b16 %v1278
        %v1423 = vunpack.c.l.b16 %v1279
        %v1424 = vunpack.c.h.b16 %v1279
        %v1425 = vunpack.c.l.b16 %v1280
        %v1426 = vunpack.c.h.b16 %v1280
        %v1427 = vunpack.c.l.b16 %v1281
        %v1428 = vunpack.c.h.b16 %v1281
        %v1429 = vunpack.c.l.b16 %v1282
        %v1430 = vunpack.c.h.b16 %v1282
        %v1431 = vunpack.c.l.b16 %v1283
        %v1432 = vunpack.c.h.b16 %v1283
        %v1433 = vunpack.c.l.b16 %v1284
        %v1434 = vunpack.c.h.b16 %v1284
        %v1435 = vunpack.c.l.b16 %v1285
        %v1436 = vunpack.c.h.b16 %v1285
        %v1437 = vunpack.c.l.b16 %v1286
        %v1438 = vunpack.c.h.b16 %v1286
        %v1439 = vunpack.c.l.b16 %v1287
        %v1440 = vunpack.c.h.b16 %v1287
        %v1441 = vunpack.c.l.b16 %v1288
        %v1442 = vunpack.c.h.b16 %v1288
        %v1443 = vunpack.c.l.b16 %v1289
        %v1444 = vunpack.c.h.b16 %v1289
        %v1445 = vunpack.c.l.b16 %v1290
        %v1446 = vunpack.c.h.b16 %v1290
        %v1447 = vunpack.c.l.b16 %v1291
        %v1448 = vunpack.c.h.b16 %v1291
        %v1449 = vunpack.c.l.b16 %v1292
        %v1450 = vunpack.c.h.b16 %v1292
        %v1451 = vunpack.c.l.b16 %v1293
        %v1452 = vunpack.c.h.b16 %v1293
        %v1453 = vunpack.c.l.b16 %v1294
        %v1454 = vunpack.c.h.b16 %v1294
        %v1455 = vunpack.c.l.b16 %v1295
        %v1456 = vunpack.c.h.b16 %v1295
        %v1457 = vunpack.c.l.b16 %v1296
        %v1458 = vunpack.c.h.b16 %v1296
        %v1459 = vunpack.c.l.b16 %v1297
        %v1460 = vunpack.c.h.b16 %v1297
        %v1461 = vunpack.c.l.b16 %v1298
        %v1462 = vunpack.c.h.b16 %v1298
        %v1463 = vunpack.c.l.b16 %v1299
        %v1464 = vunpack.c.h.b16 %v1299
        %v1465 = vunpack.c.l.b16 %v1300
        %v1466 = vunpack.c.h.b16 %v1300
        %v1467 = vunpack.c.l.b16 %v1301
        %v1468 = vunpack.c.h.b16 %v1301
        %v1469 = vunpack.c.l.b16 %v1302
        %v1470 = vunpack.c.h.b16 %v1302
        %v1471 = vunpack.c.l.b16 %v1303
        %v1472 = vunpack.c.h.b16 %v1303
        %v1473 = vunpack.c.l.b16 %v1304
        %v1474 = vunpack.c.h.b16 %v1304
        %v1475 = vunpack.c.l.b16 %v1305
        %v1476 = vunpack.c.h.b16 %v1305
        %v1477 = vunpack.c.l.b16 %v1306
        %v1478 = vunpack.c.h.b16 %v1306
        %v1479 = vunpack.c.l.b16 %v1307
        %v1480 = vunpack.c.h.b16 %v1307
        %v1481 = vunpack.c.l.b16 %v1308
        %v1482 = vunpack.c.h.b16 %v1308
        %v1483 = vunpack.c.l.b16 %v1309
        %v1484 = vunpack.c.h.b16 %v1309
        %v1485 = vunpack.c.l.b16 %v1310
        %v1486 = vunpack.c.h.b16 %v1310
        %v1487 = vunpack.c.l.b16 %v1311
        %v1488 = vunpack.c.h.b16 %v1311
        %v1489 = vunpack.c.l.b16 %v1312
        %v1490 = vunpack.c.h.b16 %v1312
        %v1491 = vunpack.c.l.b16 %v1313
        %v1492 = vunpack.c.h.b16 %v1313
        %v1493 = vunpack.c.l.b16 %v1314
        %v1494 = vunpack.c.h.b16 %v1314
        %v1495 = vunpack.c.l.b16 %v1315
        %v1496 = vunpack.c.h.b16 %v1315
        %v1497 = vunpack.c.l.b16 %v1316
        %v1498 = vunpack.c.h.b16 %v1316
        %v1499 = vunpack.c.l.b16 %v1317
        %v1500 = vunpack.c.h.b16 %v1317
        %v1501 = vunpack.c.l.b16 %v1318
        %v1502 = vunpack.c.h.b16 %v1318
        %v1503 = vunpack.c.l.b16 %v1319
        %v1504 = vunpack.c.h.b16 %v1319
        %v1505 = vunpack.c.l.b16 %v1320
        %v1506 = vunpack.c.h.b16 %v1320
        %v1507 = vunpack.c.l.b16 %v1321
        %v1508 = vunpack.c.h.b16 %v1321
        %v1509 = vunpack.c.l.b16 %v1322
        %v1510 = vunpack.c.h.b16 %v1322
        %v1511 = vunpack.c.l.b16 %v1323
        %v1512 = vunpack.c.h.b16 %v1323
        %v1513 = vunpack.c.l.b16 %v1324
        %v1514 = vunpack.c.h.b16 %v1324
        %v1515 = vunpack.c.l.b16 %v1325
        %v1516 = vunpack.c.h.b16 %v1325
        %v1517 = vunpack.c.l.b16 %v1326
        %v1518 = vunpack.c.h.b16 %v1326
        %v1519 = vunpack.c.l.b16 %v1327
        %v1520 = vunpack.c.h.b16 %v1327
        %v1521 = vunpack.c.l.b16 %v1328
        %v1522 = vunpack.c.h.b16 %v1328
        %v1523 = vunpack.c.l.b16 %v1329
        %v1524 = vunpack.c.h.b16 %v1329
        %v1525 = vunpack.c.l.b16 %v1330
        %v1526 = vunpack.c.h.b16 %v1330
        %v1527 = vunpack.c.l.b16 %v1331
        %v1528 = vunpack.c.h.b16 %v1331
        %v1529 = vunpack.c.l.b16 %v1332
        %v1530 = vunpack.c.h.b16 %v1332
        %v1531 = vunpack.c.l.b16 %v1333
        %v1532 = vunpack.c.h.b16 %v1333
        %v1533 = vunpack.c.l.b16 %v1334
        %v1534 = vunpack.c.h.b16 %v1334
        %v1535 = vunpack.c.l.b16 %v1335
        %v1536 = vunpack.c.h.b16 %v1335
        %v1537 = vunpack.c.l.b16 %v1336
        %v1538 = vunpack.c.h.b16 %v1336
        %v1539 = vunpack.c.l.b16 %v1337
        %v1540 = vunpack.c.h.b16 %v1337
        %v1541 = vunpack.c.l.b16 %v1338
        %v1542 = vunpack.c.h.b16 %v1338
        %v1543 = vpack.c.b16 %v1417, %v1415
        %v1544 = vpack.c.b16 %v1418, %v1416
        %v1545 = vpack.c.b16 %v1421, %v1419
        %v1546 = vpack.c.b16 %v1422, %v1420
        %v1547 = vpack.c.b16 %v1425, %v1423
        %v1548 = vpack.c.b16 %v1426, %v1424
        %v1549 = vpack.c.b16 %v1429, %v1427
        %v1550 = vpack.c.b16 %v1430, %v1428
        %v1551 = vpack.c.b16 %v1433, %v1431
        %v1552 = vpack.c.b16 %v1434, %v1432
        %v1553 = vpack.c.b16 %v1437, %v1435
        %v1554 = vpack.c.b16 %v1438, %v1436
        %v1555 = vpack.c.b16 %v1441, %v1439
        %v1556 = vpack.c.b16 %v1442, %v1440
        %v1557 = vpack.c.b16 %v1445, %v1443
        %v1558 = vpack.c.b16 %v1446, %v1444
        %v1559 = vpack.c.b16 %v1449, %v1447
        %v1560 = vpack.c.b16 %v1450, %v1448
        %v1561 = vpack.c.b16 %v1453, %v1451
        %v1562 = vpack.c.b16 %v1454, %v1452
        %v1563 = vpack.c.b16 %v1457, %v1455
        %v1564 = vpack.c.b16 %v1458, %v1456
        %v1565 = vpack.c.b16 %v1461, %v1459
        %v1566 = vpack.c.b16 %v1462, %v1460
        %v1567 = vpack.c.b16 %v1465, %v1463
        %v1568 = vpack.c.b16 %v1466, %v1464
        %v1569 = vpack.c.b16 %v1469, %v1467
        %v1570 = vpack.c.b16 %v1470, %v1468
        %v1571 = vpack.c.b16 %v1473, %v1471
        %v1572 = vpack.c.b16 %v1474, %v1472
        %v1573 = vpack.c.b16 %v1477, %v1475
        %v1574 = vpack.c.b16 %v1478, %v1476
        %v1575 = vpack.c.b16 %v1481, %v1479
        %v1576 = vpack.c.b16 %v1482, %v1480
        %v1577 = vpack.c.b16 %v1485, %v1483
        %v1578 = vpack.c.b16 %v1486, %v1484
        %v1579 = vpack.c.b16 %v1489, %v1487
        %v1580 = vpack.c.b16 %v1490, %v1488
        %v1581 = vpack.c.b16 %v1493, %v1491
        %v1582 = vpack.c.b16 %v1494, %v1492
        %v1583 = vpack.c.b16 %v1497, %v1495
        %v1584 = vpack.c.b16 %v1498, %v1496
        %v1585 = vpack.c.b16 %v1501, %v1499
        %v1586 = vpack.c.b16 %v1502, %v1500
        %v1587 = vpack.c.b16 %v1505, %v1503
        %v1588 = vpack.c.b16 %v1506, %v1504
        %v1589 = vpack.c.b16 %v1509, %v1507
        %v1590 = vpack.c.b16 %v1510, %v1508
        %v1591 = vpack.c.b16 %v1513, %v1511
        %v1592 = vpack.c.b16 %v1514, %v1512
        %v1593 = vpack.c.b16 %v1517, %v1515
        %v1594 = vpack.c.b16 %v1518, %v1516
        %v1595 = vpack.c.b16 %v1521, %v1519
        %v1596 = vpack.c.b16 %v1522, %v1520
        %v1597 = vpack.c.b16 %v1525, %v1523
        %v1598 = vpack.c.b16 %v1526, %v1524
        %v1599 = vpack.c.b16 %v1529, %v1527
        %v1600 = vpack.c.b16 %v1530, %v1528
        %v1601 = vpack.c.b16 %v1533, %v1531
        %v1602 = vpack.c.b16 %v1534, %v1532
        %v1603 = vpack.c.b16 %v1537, %v1535
        %v1604 = vpack.c.b16 %v1538, %v1536
        %v1605 = vpack.c.b16 %v1541, %v1539
        %v1606 = vpack.c.b16 %v1542, %v1540
        %1671 = vmatprep.subr.bf16.mxu0 %v1544
        %1672 = vmatpush1.bf16.msra.mxu0 %v1543
        %1673 = vmatprep.subr.bf16.mxu0 %v1546
        %1674 = vmatpush1.bf16.msra.mxu0 %v1545
        %1675 = vmatprep.subr.bf16.mxu0 %v1548
        %1676 = vmatpush1.bf16.msra.mxu0 %v1547
        %1677 = vmatprep.subr.bf16.mxu0 %v1550
        %1678 = vmatpush1.bf16.msra.mxu0 %v1549
        %1679 = vmatprep.subr.bf16.mxu0 %v1552
        %1680 = vmatpush1.bf16.msra.mxu0 %v1551
        %1681 = vmatprep.subr.bf16.mxu0 %v1554
        %1682 = vmatpush1.bf16.msra.mxu0 %v1553
        %1683 = vmatprep.subr.bf16.mxu0 %v1556
        %1684 = vmatpush1.bf16.msra.mxu0 %v1555
        %1685 = vmatprep.subr.bf16.mxu0 %v1558
        %1686 = vmatpush1.bf16.msra.mxu0 %v1557
        %1687 = vmatprep.subr.bf16.mxu0 %v1560
        %1688 = vmatpush1.bf16.msra.mxu0 %v1559
        %1689 = vmatprep.subr.bf16.mxu0 %v1562
        %1690 = vmatpush1.bf16.msra.mxu0 %v1561
        %1691 = vmatprep.subr.bf16.mxu0 %v1564
        %1692 = vmatpush1.bf16.msra.mxu0 %v1563
        %1693 = vmatprep.subr.bf16.mxu0 %v1566
        %1694 = vmatpush1.bf16.msra.mxu0 %v1565
        %1695 = vmatprep.subr.bf16.mxu0 %v1568
        %1696 = vmatpush1.bf16.msra.mxu0 %v1567
        %1697 = vmatprep.subr.bf16.mxu0 %v1570
        %1698 = vmatpush1.bf16.msra.mxu0 %v1569
        %1699 = vmatprep.subr.bf16.mxu0 %v1572
        %1700 = vmatpush1.bf16.msra.mxu0 %v1571
        %1701 = vmatprep.subr.bf16.mxu0 %v1574
        %1702 = vmatpush1.bf16.msra.mxu0 %v1573
        %1703 = vmatprep.mubr.bf16.mxu0 %v786
        %1704 = vmatmul.mubr.bf16.gmra.mrb[0].mxu0 %v785
        %v1705 = vpop.f32.mrb[0].mxu0
        %v1706 = vadd.f32 %v1344, %v1705
        %v1707 = vpop.f32.mrb[0].mxu0
        %v1708 = vadd.f32 %v1348, %v1707
        %v1709 = vpop.f32.mrb[0].mxu0
        %v1710 = vadd.f32 %v1344, %v1709
        %v1711 = vpop.f32.mrb[0].mxu0
        %v1712 = vadd.f32 %v1348, %v1711
        %1713 = vdwg.mxu0
        %1714 = vmatprep.subr.bf16.mxu0 %v1576
        %1715 = vmatpush1.bf16.msra.mxu0 %v1575
        %1716 = vmatprep.subr.bf16.mxu0 %v1578
        %1717 = vmatpush1.bf16.msra.mxu0 %v1577
        %1718 = vmatprep.subr.bf16.mxu0 %v1580
        %1719 = vmatpush1.bf16.msra.mxu0 %v1579
        %1720 = vmatprep.subr.bf16.mxu0 %v1582
        %1721 = vmatpush1.bf16.msra.mxu0 %v1581
        %1722 = vmatprep.subr.bf16.mxu0 %v1584
        %1723 = vmatpush1.bf16.msra.mxu0 %v1583
        %1724 = vmatprep.subr.bf16.mxu0 %v1586
        %1725 = vmatpush1.bf16.msra.mxu0 %v1585
        %1726 = vmatprep.subr.bf16.mxu0 %v1588
        %1727 = vmatpush1.bf16.msra.mxu0 %v1587
        %1728 = vmatprep.subr.bf16.mxu0 %v1590
        %1729 = vmatpush1.bf16.msra.mxu0 %v1589
        %1730 = vmatprep.subr.bf16.mxu0 %v1592
        %1731 = vmatpush1.bf16.msra.mxu0 %v1591
        %1732 = vmatprep.subr.bf16.mxu0 %v1594
        %1733 = vmatpush1.bf16.msra.mxu0 %v1593
        %1734 = vmatprep.subr.bf16.mxu0 %v1596
        %1735 = vmatpush1.bf16.msra.mxu0 %v1595
        %1736 = vmatprep.subr.bf16.mxu0 %v1598
        %1737 = vmatpush1.bf16.msra.mxu0 %v1597
        %1738 = vmatprep.subr.bf16.mxu0 %v1600
        %1739 = vmatpush1.bf16.msra.mxu0 %v1599
        %1740 = vmatprep.subr.bf16.mxu0 %v1602
        %1741 = vmatpush1.bf16.msra.mxu0 %v1601
        %1742 = vmatprep.subr.bf16.mxu0 %v1604
        %1743 = vmatpush1.bf16.msra.mxu0 %v1603
        %1744 = vmatprep.subr.bf16.mxu0 %v1606
        %1745 = vmatpush1.bf16.msra.mxu0 %v1605
        %1746 = vmatprep.mubr.bf16.mxu0 %v788
        %1747 = vmatmul.mubr.bf16.gmra.mrb[0].mxu0 %v787
        %v1748 = vpop.f32.mrb[0].mxu0
        %v1749 = vadd.f32 %v1706, %v1748
        %v1750 = vpop.f32.mrb[0].mxu0
        %v1751 = vadd.f32 %v1708, %v1750
        %v1752 = vpop.f32.mrb[0].mxu0
        %v1753 = vadd.f32 %v1710, %v1752
        %v1754 = vpop.f32.mrb[0].mxu0
        %v1755 = vadd.f32 %v1712, %v1754
        %1756 = vdwg.mxu0
        %v1757 = vtanh.pop %v1749
        %v1758 = vtanh.pop %v1751
        %v1759 = vtanh.pop %v1753
        %v1760 = vtanh.pop %v1755
        %v1761 = vpack.c.bf16 %v1273, %v1271
        %v1762 = vpack.c.bf16 %v1274, %v1272
        %v1763 = vld [vmem:[#allocation8] sm:$0xf]
        %v1764 = vld [vmem:[#allocation8 + $0x4] sm:$0xf]
        %v1765 = vld [vmem:[#allocation8 + $0x8] sm:$0xf]
        %v1766 = vld [vmem:[#allocation8 + $0xc] sm:$0xf]
        %v1767 = vld [vmem:[#allocation8 + $0x10] sm:$0xf]
        %v1768 = vld [vmem:[#allocation8 + $0x14] sm:$0xf]
        %v1769 = vld [vmem:[#allocation8 + $0x18] sm:$0xf]
        %v1770 = vld [vmem:[#allocation8 + $0x1c] sm:$0xf]
        %v1771 = vld [vmem:[#allocation8 + $0x20] sm:$0xf]
        %v1772 = vld [vmem:[#allocation8 + $0x24] sm:$0xf]
        %v1773 = vld [vmem:[#allocation8 + $0x28] sm:$0xf]
        %v1774 = vld [vmem:[#allocation8 + $0x2c] sm:$0xf]
        %v1775 = vld [vmem:[#allocation8 + $0x30] sm:$0xf]
        %v1776 = vld [vmem:[#allocation8 + $0x34] sm:$0xf]
        %v1777 = vld [vmem:[#allocation8 + $0x38] sm:$0xf]
        %v1778 = vld [vmem:[#allocation8 + $0x3c] sm:$0xf]
        %v1779 = vld [vmem:[#allocation8 + $0x40] sm:$0xf]
        %v1780 = vld [vmem:[#allocation8 + $0x44] sm:$0xf]
        %v1781 = vld [vmem:[#allocation8 + $0x48] sm:$0xf]
        %v1782 = vld [vmem:[#allocation8 + $0x4c] sm:$0xf]
        %v1783 = vld [vmem:[#allocation8 + $0x50] sm:$0xf]
        %v1784 = vld [vmem:[#allocation8 + $0x54] sm:$0xf]
        %v1785 = vld [vmem:[#allocation8 + $0x58] sm:$0xf]
        %v1786 = vld [vmem:[#allocation8 + $0x5c] sm:$0xf]
        %v1787 = vld [vmem:[#allocation8 + $0x60] sm:$0xf]
        %v1788 = vld [vmem:[#allocation8 + $0x64] sm:$0xf]
        %v1789 = vld [vmem:[#allocation8 + $0x68] sm:$0xf]
        %v1790 = vld [vmem:[#allocation8 + $0x6c] sm:$0xf]
        %v1791 = vld [vmem:[#allocation8 + $0x70] sm:$0xf]
        %v1792 = vld [vmem:[#allocation8 + $0x74] sm:$0xf]
        %v1793 = vld [vmem:[#allocation8 + $0x78] sm:$0xf]
        %v1794 = vld [vmem:[#allocation8 + $0x7c] sm:$0xf]
        %v1795 = vld [vmem:[%s8] sm:$0x1]
        %v1797 = vlaneseq
        %v1798 = vshrl.u32 %v1797, 7
        %v1799 = vsub.s32 0, %v1798
        %v1800 = vrot.slane %v1795, %v1799
        %v1834 = vunpack.c.l.b16 %v1763
        %v1835 = vunpack.c.l.b16 %v1764
        %v1836 = vunpack.c.l.b16 %v1765
        %v1837 = vunpack.c.l.b16 %v1766
        %v1838 = vunpack.c.l.b16 %v1767
        %v1839 = vunpack.c.l.b16 %v1768
        %v1840 = vunpack.c.l.b16 %v1769
        %v1841 = vunpack.c.l.b16 %v1770
        %v1842 = vunpack.c.l.b16 %v1771
        %v1843 = vunpack.c.l.b16 %v1772
        %v1844 = vunpack.c.l.b16 %v1773
        %v1845 = vunpack.c.l.b16 %v1774
        %v1846 = vunpack.c.l.b16 %v1775
        %v1847 = vunpack.c.l.b16 %v1776
        %v1848 = vunpack.c.l.b16 %v1777
        %v1849 = vunpack.c.l.b16 %v1778
        %v1850 = vunpack.c.l.b16 %v1779
        %v1851 = vunpack.c.l.b16 %v1780
        %v1852 = vunpack.c.l.b16 %v1781
        %v1853 = vunpack.c.l.b16 %v1782
        %v1854 = vunpack.c.l.b16 %v1783
        %v1855 = vunpack.c.l.b16 %v1784
        %v1856 = vunpack.c.l.b16 %v1785
        %v1857 = vunpack.c.l.b16 %v1786
        %v1858 = vunpack.c.l.b16 %v1787
        %v1859 = vunpack.c.l.b16 %v1788
        %v1860 = vunpack.c.l.b16 %v1789
        %v1861 = vunpack.c.l.b16 %v1790
        %v1862 = vunpack.c.l.b16 %v1791
        %v1863 = vunpack.c.l.b16 %v1792
        %v1864 = vunpack.c.l.b16 %v1793
        %v1865 = vunpack.c.l.b16 %v1794
        %v1866 = vpack.c.b16 %v1835, %v1834
        %v1867 = vpack.c.b16 %v1837, %v1836
        %v1868 = vpack.c.b16 %v1839, %v1838
        %v1869 = vpack.c.b16 %v1841, %v1840
        %v1870 = vpack.c.b16 %v1843, %v1842
        %v1871 = vpack.c.b16 %v1845, %v1844
        %v1872 = vpack.c.b16 %v1847, %v1846
        %v1873 = vpack.c.b16 %v1849, %v1848
        %v1874 = vpack.c.b16 %v1851, %v1850
        %v1875 = vpack.c.b16 %v1853, %v1852
        %v1876 = vpack.c.b16 %v1855, %v1854
        %v1877 = vpack.c.b16 %v1857, %v1856
        %v1878 = vpack.c.b16 %v1859, %v1858
        %v1879 = vpack.c.b16 %v1861, %v1860
        %v1880 = vpack.c.b16 %v1863, %v1862
        %v1881 = vpack.c.b16 %v1865, %v1864
        %1898 = vmatprep.subr.bf16.mxu0 0
        %1899 = vmatpush1.bf16.msra.mxu0 %v1866
        %1900 = vmatprep.subr.bf16.mxu0 0
        %1901 = vmatpush1.bf16.msra.mxu0 %v1867
        %1902 = vmatprep.subr.bf16.mxu0 0
        %1903 = vmatpush1.bf16.msra.mxu0 %v1868
        %1904 = vmatprep.subr.bf16.mxu0 0
        %1905 = vmatpush1.bf16.msra.mxu0 %v1869
        %1906 = vmatprep.subr.bf16.mxu0 0
        %1907 = vmatpush1.bf16.msra.mxu0 %v1870
        %1908 = vmatprep.subr.bf16.mxu0 0
        %1909 = vmatpush1.bf16.msra.mxu0 %v1871
        %1910 = vmatprep.subr.bf16.mxu0 0
        %1911 = vmatpush1.bf16.msra.mxu0 %v1872
        %1912 = vmatprep.subr.bf16.mxu0 0
        %1913 = vmatpush1.bf16.msra.mxu0 %v1873
        %1914 = vmatprep.subr.bf16.mxu0 0
        %1915 = vmatpush1.bf16.msra.mxu0 %v1874
        %1916 = vmatprep.subr.bf16.mxu0 0
        %1917 = vmatpush1.bf16.msra.mxu0 %v1875
        %1918 = vmatprep.subr.bf16.mxu0 0
        %1919 = vmatpush1.bf16.msra.mxu0 %v1876
        %1920 = vmatprep.subr.bf16.mxu0 0
        %1921 = vmatpush1.bf16.msra.mxu0 %v1877
        %1922 = vmatprep.subr.bf16.mxu0 0
        %1923 = vmatpush1.bf16.msra.mxu0 %v1878
        %1924 = vmatprep.subr.bf16.mxu0 0
        %1925 = vmatpush1.bf16.msra.mxu0 %v1879
        %1926 = vmatprep.subr.bf16.mxu0 0
        %1927 = vmatpush1.bf16.msra.mxu0 %v1880
        %1928 = vmatprep.subr.bf16.mxu0 0
        %1929 = vmatpush1.bf16.msra.mxu0 %v1881
        %1930 = vmatprep.mubr.bf16.mxu0 %v1762
        %1931 = vmatmul.mubr.bf16.gmra.mrb[0].mxu0 %v1761
        %v1932 = vpop.f32.mrb[0].mxu0
        %v1933 = vadd.f32 %v1800, %v1932
        %v1934 = vpop.f32.mrb[0].mxu0
        %v1935 = vpop.f32.mrb[0].mxu0
        %v1936 = vadd.f32 %v1800, %v1935
        %v1937 = vpop.f32.mrb[0].mxu0
        %1938 = vdwg.mxu0
        %v1939 = vtanh.pop %v1933
        %v1940 = vtanh.pop %v1936
        %v1941 = vld [vmem:[%s9] sm:$0x3]
        %v1943 = vlaneseq
        %v1944 = vshrl.u32 %v1943, 7
        %v1945 = vsub.s32 0, %v1944
        %v1946 = vrot.slane %v1941, %v1945
        %v1947 = vlaneseq
        %v1948 = vshrl.u32 %v1947, 7
        %v1949 = vsub.s32 1, %v1948
        %v1950 = vrot.slane %v1941, %v1949
        %v1953 = vmul.f32 %v1757, %v1946
        %v1954 = vmul.f32 %v1758, %v1950
        %v1955 = vmul.f32 %v1759, %v1946
        %v1956 = vmul.f32 %v1760, %v1950
        %v1957 = vadd.f32 %v1953, %v1954
        %1958 = vadd.xlane.f32.xlu0 %v1957
        %v1959 = vpop.xlane.xlu0 %1958
        %v1960 = vadd.f32 %v1955, %v1956
        %1961 = vadd.xlane.f32.xlu0 %v1960
        %v1962 = vpop.xlane.xlu0 %1961
        %v1963 = vlaneseq
        %v1964 = vand.u32 %v1963, 127
        %vm1965 = vcmp.eq.s32.totalorder %v1964, 8
        %v1966 = vsel %vm1965, 1, 0
        %vm1967 = vcmp.eq.s32.totalorder %v1966, 1
        %v1968 = vsel %vm1967, %v1959, %v1939
        %v1969 = vsel %vm1967, %v1962, %v1940
        %v1970 = vld [vmem:[%s10] sm:$0x1]
        %v1972 = vlaneseq
        %v1973 = vshrl.u32 %v1972, 7
        %v1974 = vsub.s32 0, %v1973
        %v1975 = vrot.slane %v1970, %v1974
        %v1977 = vadd.f32 %v1968, %v1975
        %v1978 = vadd.f32 %v1969, %v1975
        %1979 = vst [vmem:[%s439] sm:$0xff] %v1977
        %1980 = vst [vmem:[%s439 + $0x8] sm:$0xff] %v1978
        %s1981 = sand.u32 %s272, 1
        %s1982 = scalar_lea.sflag [#allocation4], %s1981
        %s1983 = sand.u32 %s272, 1
        %s1984 = smul.addr %s1983, 16
        %s1985 = scalar_lea.vmem [#allocation10], %s1984
        // Predicated region
        $region81: #{tpu_custom_call.1} parent=63 // pred_check
          %p1986 = pneg %p282
        $region82: #{tpu_custom_call.1} parent=63 // pred_check_branch
          %1988 = sbr.rel (%p1986) target = $region84
        $region83: #{tpu_custom_call.1} parent=63 // pred_region
          %s1989 = smul.u32 2, %s28
          %s1991 = ssub.s32 256, 256
          %1992 = vsyncadd %s1982, %s1991
          %s1993 = smul.addr %s1989, 128
          %s1994 = scalar_lea.hbm %s11, %s1993
          %s1995 = sshll.u32 %s1985, 4
          %s1996 = int_to_ptr.vmem [resolvable:$true] %s1995
          %2001 = dma.vmem_to_hbm [thread:$0]  %s1996, 256, %s1994, %s1982, 128, 128, 8
        $region84: #{tpu_custom_call.1} parent=63 // pred_fallthru
          _
      $region64: #{tpu_custom_call.1} parent=5 // pred_fallthru
        _
      %p2002 = scmp.le.s32.totalorder 2, %s23
      // Predicated region
      $region85: #{tpu_custom_call.1} parent=5 // pred_check
        %p2003 = pneg %p2002
      $region86: #{tpu_custom_call.1} parent=5 // pred_check_branch
        %2005 = sbr.rel (%p2003) target = $region88
      $region87: #{tpu_custom_call.1} parent=5 // pred_region
        %s2006 = ssub.s32 %s23, 2
        // Predicated region
        $region89: #{tpu_custom_call.1} parent=87 // pred_check
          %p2007 = pneg %p288
        $region90: #{tpu_custom_call.1} parent=87 // pred_check_branch
          %2009 = sbr.rel (%p2007) target = $region92
        $region91: #{tpu_custom_call.1} parent=87 // pred_region
          %s2010 = sand.u32 %s273, 1
          %s2011 = scalar_lea.sflag [#allocation4], %s2010
          %s2012 = sand.u32 %s273, 1
          %s2013 = smul.addr %s2012, 16
          %s2014 = scalar_lea.vmem [#allocation10], %s2013
          %2015 = dma.done %s2011, 256
        $region92: #{tpu_custom_call.1} parent=87 // pred_fallthru
          _
      $region88: #{tpu_custom_call.1} parent=5 // pred_fallthru
        _
    $region6: #{tpu_custom_call.1} parent=1 // loop_footer
      %s27 = sadd.s32 1, %s23
    $region7: #{tpu_custom_call.1} parent=1 // loop_footer_branch
      %22 = sbr.rel target = $region3
    $region8: #{tpu_custom_call.1} parent=1 // loop_exit
      _
    %2016 = vsyncpa [#allocation3], 1
    %s2017 = scalar_lea.sflag [#allocation3], 1
    %2018 = vsyncpa %s2017, 1
    %2019 = vsyncpa [#allocation6], 1
    %2020 = vsyncpa [#allocation9], 1
    %2021 = vsyncpa [#allocation4], 1
    %s2022 = scalar_lea.sflag [#allocation4], 1
    %2023 = vsyncpa %s2022, 1

</llo_original>
